<compile_context>
chip_gen: v7x
topology: tpu7x:2x2x1
jax: 0.10.0
libtpu: 0.0.40
codegen_flags: <defaults>
</compile_context>

<pallas_src>
import functools

import jax
import jax.numpy as jnp
from jax.experimental import pallas as pl
from jax.experimental.pallas import tpu as pltpu

HP = 128                     # hidden padded to a full 128-lane vreg
WCAT_COLS = HP + 128         # [ W_pad | W@a_l @128 | W@a_r @129 | 0 ]
_NEG_BIG = -1e30             # additive mask bias for non-edges

_VMEM_LIMIT_CACHE = None


def _vmem_limit_bytes():
    """Per-chip scoped-VMEM cap: leave headroom on v7x (64 MiB physical/core)."""
    global _VMEM_LIMIT_CACHE
    if _VMEM_LIMIT_CACHE is None:
        try:
            kind = jax.devices()[0].device_kind.lower()
        except Exception:
            kind = ""
        _VMEM_LIMIT_CACHE = (48 * 1024 * 1024) if "v7" in kind else (100 * 1024 * 1024)
    return _VMEM_LIMIT_CACHE


# ------------------------------------------------------------------ kernels ----

def _project_kernel(x_ref, w_ref, hext_ref, elr_ref):
    """Fused projection:  hc = x @ [W_pad | wl | wr | 0]   (bf16 MXU, f32 acc)."""
    hc = jnp.dot(x_ref[...], w_ref[...], preferred_element_type=jnp.float32)  # (TM,256)
    # Extended feature matrix for the aggregation matmul:
    #   cols 0:128 = h (bf16), col 128 = 1.0 (denominator column), rest = 0.
    hext_ref[:, :HP] = hc[:, :HP].astype(jnp.bfloat16)
    lane = jax.lax.broadcasted_iota(jnp.int32, (hc.shape[0], HP), 1)
    hext_ref[:, HP:] = (lane == 0).astype(jnp.bfloat16)
    # Attention terms, lane-dense f32: lane 0 = el, lane 1 = er, rest = 0.
    elr_ref[...] = hc[:, HP:]


def _attn_agg_kernel(hext_ref, el_ref, er_ref, adjb_ref, b_ref, out_ref, *, apply_relu):
    """Masked edge-softmax + aggregation for one tile of destination rows.

    hext_ref: (N, 256) bf16  [h | ones-col | 0]   (resident)
    el_ref  : (1, N)   f32   source attention term (resident)
    er_ref  : (TM, 1)  f32   destination attention term for this tile
    adjb_ref: (TM, N)  bf16  additive mask bias: 0.0 edge / -1e30 no edge (streamed)
    b_ref   : (1, 128) f32   output bias (zero-padded, resident)
    out_ref : (TM, 128)      bf16 (layer 1) or f32 (layer 2)
    """
    e = er_ref[...] + el_ref[...]                  # (TM, N) broadcast add
    e = jnp.maximum(e, 0.2 * e)                    # leaky_relu(0.2), max form (VPU)
    e = e + adjb_ref[...]                          # additive mask: one add, no selects
    # Clamp row max to >= 0: masked entries underflow to exactly 0 after exp and
    # fully-masked rows stay finite.
    e_max = jnp.maximum(jnp.max(e, axis=-1, keepdims=True), 0.0)
    p = jnp.exp(e - e_max).astype(jnp.bfloat16)    # un-normalized softmax weights
    # One 256-wide MXU matmul: cols 0:128 = aggregation, col 128 = row-sum (denom).
    agg = jnp.dot(p, hext_ref[...], preferred_element_type=jnp.float32)  # (TM,256)
    denom = jnp.maximum(agg[:, HP:HP + 1], 1e-30)
    inv = pl.reciprocal(denom, approx=True)        # EUP, deferred normalization
    res = agg[:, :HP] * inv + b_ref[...]
    if apply_relu:
        res = jnp.maximum(res, 0.0)
    out_ref[...] = res.astype(out_ref.dtype)


# ----------------------------------------------------------------- wrappers ----

def _project(x_bf16, wcat, *, block_m):
    n, f = x_bf16.shape
    return pl.pallas_call(
        _project_kernel,
        out_shape=(jax.ShapeDtypeStruct((n, WCAT_COLS), jnp.bfloat16),   # h_ext
                   jax.ShapeDtypeStruct((n, HP), jnp.float32)),          # elr
        grid=(n // block_m,),
        in_specs=[
            pl.BlockSpec((block_m, f), lambda i: (i, 0)),        # node-row tile
            pl.BlockSpec((f, WCAT_COLS), lambda i: (0, 0)),      # fused weight (resident)
        ],
        out_specs=(pl.BlockSpec((block_m, WCAT_COLS), lambda i: (i, 0)),
                   pl.BlockSpec((block_m, HP), lambda i: (i, 0))),
        compiler_params=pltpu.CompilerParams(
            dimension_semantics=("parallel",),
            vmem_limit_bytes=_vmem_limit_bytes()),
        cost_estimate=pl.CostEstimate(
            flops=2 * n * f * WCAT_COLS, transcendentals=0,
            bytes_accessed=n * f * 2 + f * WCAT_COLS * 2
                           + n * WCAT_COLS * 2 + n * HP * 4),
    )(x_bf16, wcat)


def _attn_agg(hext, el_row, er_col, adj_bias, bias_pad, *, block_m, apply_relu, out_dtype):
    n = adj_bias.shape[0]
    kernel = functools.partial(_attn_agg_kernel, apply_relu=apply_relu)
    out_bytes = 2 if out_dtype == jnp.bfloat16 else 4
    return pl.pallas_call(
        kernel,
        out_shape=jax.ShapeDtypeStruct((n, HP), out_dtype),
        grid=(n // block_m,),
        in_specs=[
            pl.BlockSpec((n, WCAT_COLS), lambda i: (0, 0)),      # h_ext (resident)
            pl.BlockSpec((1, n), lambda i: (0, 0)),              # el row (resident)
            pl.BlockSpec((block_m, 1), lambda i: (i, 0)),        # er for this dst tile
            pl.BlockSpec((block_m, n), lambda i: (i, 0)),        # adjacency bias slab
            pl.BlockSpec((1, HP), lambda i: (0, 0)),             # output bias (resident)
        ],
        out_specs=pl.BlockSpec((block_m, HP), lambda i: (i, 0)),
        compiler_params=pltpu.CompilerParams(
            dimension_semantics=("parallel",),
            vmem_limit_bytes=_vmem_limit_bytes()),
        cost_estimate=pl.CostEstimate(
            flops=2 * n * n * WCAT_COLS + 7 * n * n,
            transcendentals=n * n,
            bytes_accessed=n * n * 2 + n * WCAT_COLS * 2 + n * HP * out_bytes),
    )(hext, el_row, er_col, adj_bias, bias_pad)


def _gat_layer(x_bf16, adj_bias, wcat, bias_pad, *, block_m, apply_relu, out_dtype):
    n = x_bf16.shape[0]
    hext, elr = _project(x_bf16, wcat, block_m=block_m)
    el_row = elr[:, 0].reshape(1, n)      # tiny (N,) transpose in XLA
    er_col = elr[:, 1:2]                  # (N, 1)
    return _attn_agg(hext, el_row, er_col, adj_bias, bias_pad,
                     block_m=block_m, apply_relu=apply_relu, out_dtype=out_dtype)


def _make_wcat(w, al, ar, fin_padded):
    """Fused projection weight [W | W@a_l | W@a_r], zero-padded to (fin_padded, 256)."""
    fin, h = w.shape
    wl = (w @ al.reshape(h, 1))[:, 0]     # el = x @ wl
    wr = (w @ ar.reshape(h, 1))[:, 0]     # er = x @ wr
    wcat = jnp.zeros((fin_padded, WCAT_COLS), jnp.float32)
    wcat = wcat.at[:fin, :h].set(w)
    wcat = wcat.at[:fin, HP].set(wl)
    wcat = wcat.at[:fin, HP + 1].set(wr)
    return wcat.astype(jnp.bfloat16)


def _pad_bias(b):
    h = b.shape[-1]
    return jnp.zeros((1, HP), jnp.float32).at[:, :h].set(b.reshape(1, h))


def ant_gnn_forward(x, adj, params, *, block_m=None):
    """x: (N, F) f32; adj: (N, N) with adj[i, j] > 0 iff edge j -> i.

    Returns (N, 1, hidden) to match DGL's (nodes, num_heads, out_feats).
    """
    n, f = x.shape
    hidden = params["w1"].shape[1]
    assert hidden <= HP
    if block_m is None:
        block_m = n if n <= 512 else 512
    assert n % block_m == 0, "num_nodes must be divisible by block_m"

    # Additive mask bias (0.0 edge / -1e30 no edge) in bf16: single add in-kernel
    # and half the dominant N^2 HBM traffic.
    adj_bias = jnp.where(adj > 0, jnp.float32(0.0),
                         jnp.float32(_NEG_BIG)).astype(jnp.bfloat16)
    wcat1 = _make_wcat(params["w1"], params["al1"], params["ar1"], f)
    wcat2 = _make_wcat(params["w2"], params["al2"], params["ar2"], HP)
    b1 = _pad_bias(params["b1"])
    b2 = _pad_bias(params["b2"])
    x_bf16 = x.astype(jnp.bfloat16)       # cast once in the wrapper

    h1 = _gat_layer(x_bf16, adj_bias, wcat1, b1, block_m=block_m,
                    apply_relu=True, out_dtype=jnp.bfloat16)   # bf16 -> layer 2 reads bf16
    h2 = _gat_layer(h1, adj_bias, wcat2, b2, block_m=block_m,
                    apply_relu=False, out_dtype=jnp.float32)
    return h2[:, :hidden].reshape(n, 1, hidden)


def init_params(key, num_features, hidden_size):
    """Deterministic xavier-style init matching DGL GATConv parameter shapes."""
    ks = jax.random.split(key, 6)

    def xavier(k, shape):
        fan_in, fan_out = shape[0], shape[-1]
        std = jnp.sqrt(2.0) * jnp.sqrt(2.0 / (fan_in + fan_out))
        return (std * jax.random.normal(k, shape)).astype(jnp.float32)

    return {
        # layer 1: in=num_features, out=hidden_size, heads=1
        "w1":  xavier(ks[0], (num_features, hidden_size)),
        "al1": xavier(ks[1], (1, hidden_size)),            # attn_l (source)
        "ar1": xavier(ks[2], (hidden_size, 1)),            # attn_r (dest)
        "b1":  jnp.zeros((1, hidden_size), jnp.float32),   # output bias
        # layer 2: in=hidden_size, out=hidden_size, heads=1
        "w2":  xavier(ks[3], (hidden_size, hidden_size)),
        "al2": xavier(ks[4], (1, hidden_size)),
        "ar2": xavier(ks[5], (hidden_size, 1)),
        "b2":  jnp.zeros((1, hidden_size), jnp.float32),
    }


def _reference_forward(x, adj, params):
    """Pure-JAX f32 reference (DGL GATConv semantics) for a loose sanity check."""
    def layer(xin, w, al, ar, b):
        h = xin @ w                                        # (N, H)
        el = (h * al.reshape(1, -1)).sum(-1)               # source term   (N,)
        er = (h @ ar).reshape(-1)                          # dest term     (N,)
        e = el[None, :] + er[:, None]                      # e[i, j] = el[j] + er[i]
        e = jnp.where(e > 0, e, 0.2 * e)                   # leaky_relu(0.2)
        e = jnp.where(adj > 0, e, -jnp.inf)                # masked edge softmax
        alpha = jax.nn.softmax(e, axis=-1)
        return alpha @ h + b
    h1 = jax.nn.relu(layer(x, params["w1"], params["al1"], params["ar1"], params["b1"]))
    return layer(h1, params["w2"], params["al2"], params["ar2"], params["b2"])


if __name__ == "__main__":
    num_nodes = 64
    num_features = 8
    hidden_size = 32
    block_m = 32            # 2 destination-row tiles -> exercises the grid/pipeline

    key = jax.random.PRNGKey(0)
    k_x, k_adj, k_p = jax.random.split(key, 3)

    x = jax.random.normal(k_x, (num_nodes, num_features), dtype=jnp.float32)

    # Random sparse-ish adjacency (dst x src) with self-loops so every node has
    # at least one incoming edge (0-in-degree would give bias-only output here,
    # whereas DGL errors).
    adj = (jax.random.uniform(k_adj, (num_nodes, num_nodes)) < 0.3)
    adj = jnp.logical_or(adj, jnp.eye(num_nodes, dtype=bool)).astype(jnp.float32)

    params = init_params(k_p, num_features, hidden_size)

    fwd = jax.jit(functools.partial(ant_gnn_forward, block_m=block_m))
    out = fwd(x, adj, params)
    jax.block_until_ready(out)

    assert out.shape == (num_nodes, 1, hidden_size)
    assert bool(jnp.all(jnp.isfinite(out)))

    # Loose numerical check against the f32 reference (kernel runs in bf16).
    ref = _reference_forward(x, adj, params).reshape(num_nodes, 1, hidden_size)
    rel = float(jnp.linalg.norm(out - ref) / (jnp.linalg.norm(ref) + 1e-12))
    assert rel < 0.1, f"relative error too high: {rel}"

    print("KERNEL_OK")
</pallas_src>

<mosaic_0001>
module attributes {stable_mosaic.version = 11 : i64} {
  func.func @_project_kernel(%arg0: i32, %arg1: memref<32x8xbf16, #tpu.memory_space<vmem>>, %arg2: memref<8x256xbf16, #tpu.memory_space<vmem>>, %arg3: memref<32x256xbf16, #tpu.memory_space<vmem>>, %arg4: memref<32x128xf32, #tpu.memory_space<vmem>>) attributes {dimension_semantics = [#tpu.dimension_semantics<parallel>], iteration_bounds = array<i64: 2>, scalar_prefetch = 0 : i64, scratch_operands = 0 : i64, tpu.core_type = #tpu.core_type<tc>, window_params = [{transform_indices = @transform_0, window_bounds = array<i64: 32, 8>}, {pipeline_mode = #tpu.pipeline_mode<synchronous>, transform_indices = @transform_1, window_bounds = array<i64: 8, 256>}, {transform_indices = @transform_2, window_bounds = array<i64: 32, 256>}, {transform_indices = @transform_3, window_bounds = array<i64: 32, 128>}]} {
    %c0 = arith.constant 0 : index
    %c0_0 = arith.constant 0 : index
    %0 = vector.load %arg1[%c0, %c0_0] : memref<32x8xbf16, #tpu.memory_space<vmem>>, vector<32x8xbf16>
    %c0_1 = arith.constant 0 : index
    %c0_2 = arith.constant 0 : index
    %1 = vector.load %arg2[%c0_1, %c0_2] : memref<8x256xbf16, #tpu.memory_space<vmem>>, vector<8x256xbf16>
    %cst = arith.constant dense<0.000000e+00> : vector<32x256xf32>
    %2 = tpu.matmul %0, %1, %cst {dimension_numbers = #tpu.dot_dimension_numbers<[1], [0], [0], [1], [0, 0, 1, 1], [], []>} : vector<32x8xbf16>, vector<8x256xbf16>, vector<32x256xf32> -> vector<32x256xf32>
    %3 = vector.extract_strided_slice %2 {offsets = [0, 0], sizes = [32, 128], strides = [1, 1]} : vector<32x256xf32> to vector<32x128xf32>
    %4 = arith.truncf %3 : vector<32x128xf32> to vector<32x128xbf16>
    %c0_3 = arith.constant 0 : index
    %c0_4 = arith.constant 0 : index
    %5 = vector.load %arg3[%c0_3, %c0_4] : memref<32x256xbf16, #tpu.memory_space<vmem>>, vector<32x128xbf16>
    tpu.vector_store %arg3[%c0_3, %c0_4], %4 {strides = array<i32>} : memref<32x256xbf16, #tpu.memory_space<vmem>>, vector<32x128xbf16>,
    %6 = tpu.iota {dimensions = array<i32: 1>} : vector<32x128xi32>
    %c0_i32 = arith.constant 0 : i32
    %7 = vector.broadcast %c0_i32 : i32 to vector<32x128xi32>
    %8 = arith.cmpi eq, %6, %7 : vector<32x128xi32>
    %9 = arith.extui %8 : vector<32x128xi1> to vector<32x128xi32>
    %10 = arith.sitofp %9 : vector<32x128xi32> to vector<32x128xf32>
    %11 = arith.truncf %10 : vector<32x128xf32> to vector<32x128xbf16>
    %c0_5 = arith.constant 0 : index
    %c128 = arith.constant 128 : index
    %12 = vector.load %arg3[%c0_5, %c128] : memref<32x256xbf16, #tpu.memory_space<vmem>>, vector<32x128xbf16>
    tpu.vector_store %arg3[%c0_5, %c128], %11 {strides = array<i32>} : memref<32x256xbf16, #tpu.memory_space<vmem>>, vector<32x128xbf16>,
    %13 = vector.extract_strided_slice %2 {offsets = [0, 128], sizes = [32, 128], strides = [1, 1]} : vector<32x256xf32> to vector<32x128xf32>
    %c0_6 = arith.constant 0 : index
    %c0_7 = arith.constant 0 : index
    %14 = vector.load %arg4[%c0_6, %c0_7] : memref<32x128xf32, #tpu.memory_space<vmem>>, vector<32x128xf32>
    tpu.vector_store %arg4[%c0_6, %c0_7], %13 {strides = array<i32>} : memref<32x128xf32, #tpu.memory_space<vmem>>, vector<32x128xf32>,
    return
  }
  func.func @transform_0(%arg0: i32) -> (i32, i32) {
    %c0_i32 = arith.constant 0 : i32
    %c0_i32_0 = arith.constant 0 : i32
    return %arg0, %c0_i32 : i32, i32
  }
  func.func @transform_1(%arg0: i32) -> (i32, i32) {
    %c0_i32 = arith.constant 0 : i32
    %c0_i32_0 = arith.constant 0 : i32
    %c0_i32_1 = arith.constant 0 : i32
    return %c0_i32, %c0_i32_0 : i32, i32
  }
  func.func @transform_2(%arg0: i32) -> (i32, i32) {
    %c0_i32 = arith.constant 0 : i32
    %c0_i32_0 = arith.constant 0 : i32
    return %arg0, %c0_i32 : i32, i32
  }
  func.func @transform_3(%arg0: i32) -> (i32, i32) {
    %c0_i32 = arith.constant 0 : i32
    %c0_i32_0 = arith.constant 0 : i32
    return %arg0, %c0_i32 : i32, i32
  }
}

module attributes {stable_mosaic.version = 11 : i64} {
  func.func @_project_kernel(%arg0: i32, %arg1: memref<32x128xbf16, #tpu.memory_space<vmem>>, %arg2: memref<128x256xbf16, #tpu.memory_space<vmem>>, %arg3: memref<32x256xbf16, #tpu.memory_space<vmem>>, %arg4: memref<32x128xf32, #tpu.memory_space<vmem>>) attributes {dimension_semantics = [#tpu.dimension_semantics<parallel>], iteration_bounds = array<i64: 2>, scalar_prefetch = 0 : i64, scratch_operands = 0 : i64, tpu.core_type = #tpu.core_type<tc>, window_params = [{transform_indices = @transform_0, window_bounds = array<i64: 32, 128>}, {pipeline_mode = #tpu.pipeline_mode<synchronous>, transform_indices = @transform_1, window_bounds = array<i64: 128, 256>}, {transform_indices = @transform_2, window_bounds = array<i64: 32, 256>}, {transform_indices = @transform_3, window_bounds = array<i64: 32, 128>}]} {
    %c0 = arith.constant 0 : index
    %c0_0 = arith.constant 0 : index
    %0 = vector.load %arg1[%c0, %c0_0] : memref<32x128xbf16, #tpu.memory_space<vmem>>, vector<32x128xbf16>
    %c0_1 = arith.constant 0 : index
    %c0_2 = arith.constant 0 : index
    %1 = vector.load %arg2[%c0_1, %c0_2] : memref<128x256xbf16, #tpu.memory_space<vmem>>, vector<128x256xbf16>
    %cst = arith.constant dense<0.000000e+00> : vector<32x256xf32>
    %2 = tpu.matmul %0, %1, %cst {dimension_numbers = #tpu.dot_dimension_numbers<[1], [0], [0], [1], [0, 0, 1, 1], [], []>} : vector<32x128xbf16>, vector<128x256xbf16>, vector<32x256xf32> -> vector<32x256xf32>
    %3 = vector.extract_strided_slice %2 {offsets = [0, 0], sizes = [32, 128], strides = [1, 1]} : vector<32x256xf32> to vector<32x128xf32>
    %4 = arith.truncf %3 : vector<32x128xf32> to vector<32x128xbf16>
    %c0_3 = arith.constant 0 : index
    %c0_4 = arith.constant 0 : index
    %5 = vector.load %arg3[%c0_3, %c0_4] : memref<32x256xbf16, #tpu.memory_space<vmem>>, vector<32x128xbf16>
    tpu.vector_store %arg3[%c0_3, %c0_4], %4 {strides = array<i32>} : memref<32x256xbf16, #tpu.memory_space<vmem>>, vector<32x128xbf16>,
    %6 = tpu.iota {dimensions = array<i32: 1>} : vector<32x128xi32>
    %c0_i32 = arith.constant 0 : i32
    %7 = vector.broadcast %c0_i32 : i32 to vector<32x128xi32>
    %8 = arith.cmpi eq, %6, %7 : vector<32x128xi32>
    %9 = arith.extui %8 : vector<32x128xi1> to vector<32x128xi32>
    %10 = arith.sitofp %9 : vector<32x128xi32> to vector<32x128xf32>
    %11 = arith.truncf %10 : vector<32x128xf32> to vector<32x128xbf16>
    %c0_5 = arith.constant 0 : index
    %c128 = arith.constant 128 : index
    %12 = vector.load %arg3[%c0_5, %c128] : memref<32x256xbf16, #tpu.memory_space<vmem>>, vector<32x128xbf16>
    tpu.vector_store %arg3[%c0_5, %c128], %11 {strides = array<i32>} : memref<32x256xbf16, #tpu.memory_space<vmem>>, vector<32x128xbf16>,
    %13 = vector.extract_strided_slice %2 {offsets = [0, 128], sizes = [32, 128], strides = [1, 1]} : vector<32x256xf32> to vector<32x128xf32>
    %c0_6 = arith.constant 0 : index
    %c0_7 = arith.constant 0 : index
    %14 = vector.load %arg4[%c0_6, %c0_7] : memref<32x128xf32, #tpu.memory_space<vmem>>, vector<32x128xf32>
    tpu.vector_store %arg4[%c0_6, %c0_7], %13 {strides = array<i32>} : memref<32x128xf32, #tpu.memory_space<vmem>>, vector<32x128xf32>,
    return
  }
  func.func @transform_0(%arg0: i32) -> (i32, i32) {
    %c0_i32 = arith.constant 0 : i32
    %c0_i32_0 = arith.constant 0 : i32
    return %arg0, %c0_i32 : i32, i32
  }
  func.func @transform_1(%arg0: i32) -> (i32, i32) {
    %c0_i32 = arith.constant 0 : i32
    %c0_i32_0 = arith.constant 0 : i32
    %c0_i32_1 = arith.constant 0 : i32
    return %c0_i32, %c0_i32_0 : i32, i32
  }
  func.func @transform_2(%arg0: i32) -> (i32, i32) {
    %c0_i32 = arith.constant 0 : i32
    %c0_i32_0 = arith.constant 0 : i32
    return %arg0, %c0_i32 : i32, i32
  }
  func.func @transform_3(%arg0: i32) -> (i32, i32) {
    %c0_i32 = arith.constant 0 : i32
    %c0_i32_0 = arith.constant 0 : i32
    return %arg0, %c0_i32 : i32, i32
  }
}

module attributes {stable_mosaic.version = 11 : i64} {
  func.func @_attn_agg_kernel(%arg0: i32, %arg1: memref<64x256xbf16, #tpu.memory_space<vmem>>, %arg2: memref<1x64xf32, #tpu.memory_space<vmem>>, %arg3: memref<32x1xf32, #tpu.memory_space<vmem>>, %arg4: memref<32x64xbf16, #tpu.memory_space<vmem>>, %arg5: memref<1x128xf32, #tpu.memory_space<vmem>>, %arg6: memref<32x128xbf16, #tpu.memory_space<vmem>>) attributes {dimension_semantics = [#tpu.dimension_semantics<parallel>], iteration_bounds = array<i64: 2>, scalar_prefetch = 0 : i64, scratch_operands = 0 : i64, tpu.core_type = #tpu.core_type<tc>, window_params = [{pipeline_mode = #tpu.pipeline_mode<synchronous>, transform_indices = @transform_0, window_bounds = array<i64: 64, 256>}, {pipeline_mode = #tpu.pipeline_mode<synchronous>, transform_indices = @transform_1, window_bounds = array<i64: 1, 64>}, {transform_indices = @transform_2, window_bounds = array<i64: 32, 1>}, {transform_indices = @transform_3, window_bounds = array<i64: 32, 64>}, {pipeline_mode = #tpu.pipeline_mode<synchronous>, transform_indices = @transform_4, window_bounds = array<i64: 1, 128>}, {transform_indices = @transform_5, window_bounds = array<i64: 32, 128>}]} {
    %c0 = arith.constant 0 : index
    %c0_0 = arith.constant 0 : index
    %0 = vector.load %arg3[%c0, %c0_0] : memref<32x1xf32, #tpu.memory_space<vmem>>, vector<32x1xf32>
    %c0_1 = arith.constant 0 : index
    %c0_2 = arith.constant 0 : index
    %1 = vector.load %arg2[%c0_1, %c0_2] : memref<1x64xf32, #tpu.memory_space<vmem>>, vector<1x64xf32>
    %2 = vector.broadcast %0 : vector<32x1xf32> to vector<32x64xf32>
    %3 = vector.broadcast %1 : vector<1x64xf32> to vector<32x64xf32>
    %4 = arith.addf %2, %3 : vector<32x64xf32>
    %cst = arith.constant 2.000000e-01 : f32
    %5 = vector.broadcast %cst : f32 to vector<32x64xf32>
    %6 = arith.mulf %5, %4 : vector<32x64xf32>
    %7 = arith.maximumf %4, %6 : vector<32x64xf32>
    %c0_3 = arith.constant 0 : index
    %c0_4 = arith.constant 0 : index
    %8 = vector.load %arg4[%c0_3, %c0_4] : memref<32x64xbf16, #tpu.memory_space<vmem>>, vector<32x64xbf16>
    %9 = arith.extf %8 : vector<32x64xbf16> to vector<32x64xf32>
    %10 = arith.addf %7, %9 : vector<32x64xf32>
    %cst_5 = arith.constant dense<0xFF800000> : vector<32xf32>
    %11 = vector.multi_reduction <maximumf>, %10, %cst_5 [1] : vector<32x64xf32> to vector<32xf32>
    %12 = vector.shape_cast %11 : vector<32xf32> to vector<32x1xf32>
    %cst_6 = arith.constant 0.000000e+00 : f32
    %13 = vector.broadcast %cst_6 : f32 to vector<32x1xf32>
    %14 = arith.maximumf %12, %13 : vector<32x1xf32>
    %15 = vector.broadcast %14 : vector<32x1xf32> to vector<32x64xf32>
    %16 = arith.subf %10, %15 : vector<32x64xf32>
    %17 = math.exp %16 : vector<32x64xf32>
    %18 = arith.truncf %17 : vector<32x64xf32> to vector<32x64xbf16>
    %c0_7 = arith.constant 0 : index
    %c0_8 = arith.constant 0 : index
    %19 = vector.load %arg1[%c0_7, %c0_8] : memref<64x256xbf16, #tpu.memory_space<vmem>>, vector<64x256xbf16>
    %cst_9 = arith.constant dense<0.000000e+00> : vector<32x256xf32>
    %20 = tpu.matmul %18, %19, %cst_9 {dimension_numbers = #tpu.dot_dimension_numbers<[1], [0], [0], [1], [0, 0, 1, 1], [], []>} : vector<32x64xbf16>, vector<64x256xbf16>, vector<32x256xf32> -> vector<32x256xf32>
    %21 = vector.extract_strided_slice %20 {offsets = [0, 128], sizes = [32, 1], strides = [1, 1]} : vector<32x256xf32> to vector<32x1xf32>
    %cst_10 = arith.constant 1.000000e-30 : f32
    %22 = vector.broadcast %cst_10 : f32 to vector<32x1xf32>
    %23 = arith.maximumf %21, %22 : vector<32x1xf32>
    %24 = tpu.reciprocal %23 {approx = true} : vector<32x1xf32> -> vector<32x1xf32>
    %25 = vector.extract_strided_slice %20 {offsets = [0, 0], sizes = [32, 128], strides = [1, 1]} : vector<32x256xf32> to vector<32x128xf32>
    %26 = vector.broadcast %24 : vector<32x1xf32> to vector<32x128xf32>
    %27 = arith.mulf %25, %26 : vector<32x128xf32>
    %c0_11 = arith.constant 0 : index
    %c0_12 = arith.constant 0 : index
    %28 = vector.load %arg5[%c0_11, %c0_12] : memref<1x128xf32, #tpu.memory_space<vmem>>, vector<1x128xf32>
    %29 = vector.broadcast %28 : vector<1x128xf32> to vector<32x128xf32>
    %30 = arith.addf %27, %29 : vector<32x128xf32>
    %cst_13 = arith.constant 0.000000e+00 : f32
    %31 = vector.broadcast %cst_13 : f32 to vector<32x128xf32>
    %32 = arith.maximumf %30, %31 : vector<32x128xf32>
    %33 = arith.truncf %32 : vector<32x128xf32> to vector<32x128xbf16>
    %c0_14 = arith.constant 0 : index
    %c0_15 = arith.constant 0 : index
    %34 = vector.load %arg6[%c0_14, %c0_15] : memref<32x128xbf16, #tpu.memory_space<vmem>>, vector<32x128xbf16>
    tpu.vector_store %arg6[%c0_14, %c0_15], %33 {strides = array<i32>} : memref<32x128xbf16, #tpu.memory_space<vmem>>, vector<32x128xbf16>,
    return
  }
  func.func @transform_0(%arg0: i32) -> (i32, i32) {
    %c0_i32 = arith.constant 0 : i32
    %c0_i32_0 = arith.constant 0 : i32
    %c0_i32_1 = arith.constant 0 : i32
    return %c0_i32, %c0_i32_0 : i32, i32
  }
  func.func @transform_1(%arg0: i32) -> (i32, i32) {
    %c0_i32 = arith.constant 0 : i32
    %c0_i32_0 = arith.constant 0 : i32
    %c0_i32_1 = arith.constant 0 : i32
    return %c0_i32, %c0_i32_0 : i32, i32
  }
  func.func @transform_2(%arg0: i32) -> (i32, i32) {
    %c0_i32 = arith.constant 0 : i32
    %c0_i32_0 = arith.constant 0 : i32
    return %arg0, %c0_i32 : i32, i32
  }
  func.func @transform_3(%arg0: i32) -> (i32, i32) {
    %c0_i32 = arith.constant 0 : i32
    %c0_i32_0 = arith.constant 0 : i32
    return %arg0, %c0_i32 : i32, i32
  }
  func.func @transform_4(%arg0: i32) -> (i32, i32) {
    %c0_i32 = arith.constant 0 : i32
    %c0_i32_0 = arith.constant 0 : i32
    %c0_i32_1 = arith.constant 0 : i32
    return %c0_i32, %c0_i32_0 : i32, i32
  }
  func.func @transform_5(%arg0: i32) -> (i32, i32) {
    %c0_i32 = arith.constant 0 : i32
    %c0_i32_0 = arith.constant 0 : i32
    return %arg0, %c0_i32 : i32, i32
  }
}

module attributes {stable_mosaic.version = 11 : i64} {
  func.func @_attn_agg_kernel(%arg0: i32, %arg1: memref<64x256xbf16, #tpu.memory_space<vmem>>, %arg2: memref<1x64xf32, #tpu.memory_space<vmem>>, %arg3: memref<32x1xf32, #tpu.memory_space<vmem>>, %arg4: memref<32x64xbf16, #tpu.memory_space<vmem>>, %arg5: memref<1x128xf32, #tpu.memory_space<vmem>>, %arg6: memref<32x128xf32, #tpu.memory_space<vmem>>) attributes {dimension_semantics = [#tpu.dimension_semantics<parallel>], iteration_bounds = array<i64: 2>, scalar_prefetch = 0 : i64, scratch_operands = 0 : i64, tpu.core_type = #tpu.core_type<tc>, window_params = [{pipeline_mode = #tpu.pipeline_mode<synchronous>, transform_indices = @transform_0, window_bounds = array<i64: 64, 256>}, {pipeline_mode = #tpu.pipeline_mode<synchronous>, transform_indices = @transform_1, window_bounds = array<i64: 1, 64>}, {transform_indices = @transform_2, window_bounds = array<i64: 32, 1>}, {transform_indices = @transform_3, window_bounds = array<i64: 32, 64>}, {pipeline_mode = #tpu.pipeline_mode<synchronous>, transform_indices = @transform_4, window_bounds = array<i64: 1, 128>}, {transform_indices = @transform_5, window_bounds = array<i64: 32, 128>}]} {
    %c0 = arith.constant 0 : index
    %c0_0 = arith.constant 0 : index
    %0 = vector.load %arg3[%c0, %c0_0] : memref<32x1xf32, #tpu.memory_space<vmem>>, vector<32x1xf32>
    %c0_1 = arith.constant 0 : index
    %c0_2 = arith.constant 0 : index
    %1 = vector.load %arg2[%c0_1, %c0_2] : memref<1x64xf32, #tpu.memory_space<vmem>>, vector<1x64xf32>
    %2 = vector.broadcast %0 : vector<32x1xf32> to vector<32x64xf32>
    %3 = vector.broadcast %1 : vector<1x64xf32> to vector<32x64xf32>
    %4 = arith.addf %2, %3 : vector<32x64xf32>
    %cst = arith.constant 2.000000e-01 : f32
    %5 = vector.broadcast %cst : f32 to vector<32x64xf32>
    %6 = arith.mulf %5, %4 : vector<32x64xf32>
    %7 = arith.maximumf %4, %6 : vector<32x64xf32>
    %c0_3 = arith.constant 0 : index
    %c0_4 = arith.constant 0 : index
    %8 = vector.load %arg4[%c0_3, %c0_4] : memref<32x64xbf16, #tpu.memory_space<vmem>>, vector<32x64xbf16>
    %9 = arith.extf %8 : vector<32x64xbf16> to vector<32x64xf32>
    %10 = arith.addf %7, %9 : vector<32x64xf32>
    %cst_5 = arith.constant dense<0xFF800000> : vector<32xf32>
    %11 = vector.multi_reduction <maximumf>, %10, %cst_5 [1] : vector<32x64xf32> to vector<32xf32>
    %12 = vector.shape_cast %11 : vector<32xf32> to vector<32x1xf32>
    %cst_6 = arith.constant 0.000000e+00 : f32
    %13 = vector.broadcast %cst_6 : f32 to vector<32x1xf32>
    %14 = arith.maximumf %12, %13 : vector<32x1xf32>
    %15 = vector.broadcast %14 : vector<32x1xf32> to vector<32x64xf32>
    %16 = arith.subf %10, %15 : vector<32x64xf32>
    %17 = math.exp %16 : vector<32x64xf32>
    %18 = arith.truncf %17 : vector<32x64xf32> to vector<32x64xbf16>
    %c0_7 = arith.constant 0 : index
    %c0_8 = arith.constant 0 : index
    %19 = vector.load %arg1[%c0_7, %c0_8] : memref<64x256xbf16, #tpu.memory_space<vmem>>, vector<64x256xbf16>
    %cst_9 = arith.constant dense<0.000000e+00> : vector<32x256xf32>
    %20 = tpu.matmul %18, %19, %cst_9 {dimension_numbers = #tpu.dot_dimension_numbers<[1], [0], [0], [1], [0, 0, 1, 1], [], []>} : vector<32x64xbf16>, vector<64x256xbf16>, vector<32x256xf32> -> vector<32x256xf32>
    %21 = vector.extract_strided_slice %20 {offsets = [0, 128], sizes = [32, 1], strides = [1, 1]} : vector<32x256xf32> to vector<32x1xf32>
    %cst_10 = arith.constant 1.000000e-30 : f32
    %22 = vector.broadcast %cst_10 : f32 to vector<32x1xf32>
    %23 = arith.maximumf %21, %22 : vector<32x1xf32>
    %24 = tpu.reciprocal %23 {approx = true} : vector<32x1xf32> -> vector<32x1xf32>
    %25 = vector.extract_strided_slice %20 {offsets = [0, 0], sizes = [32, 128], strides = [1, 1]} : vector<32x256xf32> to vector<32x128xf32>
    %26 = vector.broadcast %24 : vector<32x1xf32> to vector<32x128xf32>
    %27 = arith.mulf %25, %26 : vector<32x128xf32>
    %c0_11 = arith.constant 0 : index
    %c0_12 = arith.constant 0 : index
    %28 = vector.load %arg5[%c0_11, %c0_12] : memref<1x128xf32, #tpu.memory_space<vmem>>, vector<1x128xf32>
    %29 = vector.broadcast %28 : vector<1x128xf32> to vector<32x128xf32>
    %30 = arith.addf %27, %29 : vector<32x128xf32>
    %c0_13 = arith.constant 0 : index
    %c0_14 = arith.constant 0 : index
    %31 = vector.load %arg6[%c0_13, %c0_14] : memref<32x128xf32, #tpu.memory_space<vmem>>, vector<32x128xf32>
    tpu.vector_store %arg6[%c0_13, %c0_14], %30 {strides = array<i32>} : memref<32x128xf32, #tpu.memory_space<vmem>>, vector<32x128xf32>,
    return
  }
  func.func @transform_0(%arg0: i32) -> (i32, i32) {
    %c0_i32 = arith.constant 0 : i32
    %c0_i32_0 = arith.constant 0 : i32
    %c0_i32_1 = arith.constant 0 : i32
    return %c0_i32, %c0_i32_0 : i32, i32
  }
  func.func @transform_1(%arg0: i32) -> (i32, i32) {
    %c0_i32 = arith.constant 0 : i32
    %c0_i32_0 = arith.constant 0 : i32
    %c0_i32_1 = arith.constant 0 : i32
    return %c0_i32, %c0_i32_0 : i32, i32
  }
  func.func @transform_2(%arg0: i32) -> (i32, i32) {
    %c0_i32 = arith.constant 0 : i32
    %c0_i32_0 = arith.constant 0 : i32
    return %arg0, %c0_i32 : i32, i32
  }
  func.func @transform_3(%arg0: i32) -> (i32, i32) {
    %c0_i32 = arith.constant 0 : i32
    %c0_i32_0 = arith.constant 0 : i32
    return %arg0, %c0_i32 : i32, i32
  }
  func.func @transform_4(%arg0: i32) -> (i32, i32) {
    %c0_i32 = arith.constant 0 : i32
    %c0_i32_0 = arith.constant 0 : i32
    %c0_i32_1 = arith.constant 0 : i32
    return %c0_i32, %c0_i32_0 : i32, i32
  }
  func.func @transform_5(%arg0: i32) -> (i32, i32) {
    %c0_i32 = arith.constant 0 : i32
    %c0_i32_0 = arith.constant 0 : i32
    return %arg0, %c0_i32 : i32, i32
  }
}

</mosaic_0001>

<llo_original>
// kernel: ant_gnn_forward.4
$region0: #{ant_gnn_forward.4}
  #allocation0 [shape = 'u32[]', space=smem, size = 0x4, offset = 0x4, fixed_abs, tag = 'smem constant byte address 0x4 - core index']
  #allocation1 [shape = 'u32[144,128]{1,0:T(1,128)}', space=vmem, size = 0x12000, scoped, tag = 'internal scratch']
  %s0 = inlined_call_operand.hbm [shape: bf16[64,8], index: 0, kind: input, shape index: {}]
  %s1 = inlined_call_operand.hbm [shape: bf16[8,256], index: 1, kind: input, shape index: {}]
  %s2 = inlined_call_operand.hbm [shape: bf16[64,256], index: 2, kind: output, shape index: {0}]
  %s3 = inlined_call_operand.hbm [shape: f32[64,128], index: 3, kind: output, shape index: {1}]
  %4 = xla_tuple %s2, %s3
  %s5 = sld [smem:[#allocation0]]
  $region57: #{ant_gnn_forward.4} parent=0
    _
  %s7 = ssub.s32 1, %s5
  %s8 = scalar_select 0, %s7, %s5
  $region1: #{ant_gnn_forward.4} parent=0
    #allocation2 [shape = 'u8[16384]{0}', space=vmem, size = 0x4000, scoped, tag = 'input window, operand 0']
    #allocation3 [shape = 's32[2]{0}', space=sflag, size = 0x8, scoped, tag = 'scoped memory for ant_gnn_forward.4']
    #allocation4 [shape = 's32[2]{0}', space=sflag, size = 0x8, scoped, tag = 'scoped memory for ant_gnn_forward.4']
    #allocation5 [shape = 'u8[4096]{0}', space=vmem, size = 0x1000, scoped, tag = 'input window, operand 1, single buffered']
    #allocation6 [shape = 's32[1]{0}', space=sflag, size = 0x4, scoped, tag = 'scoped memory for ant_gnn_forward.4']
    #allocation7 [shape = 'u8[32768]{0}', space=vmem, size = 0x8000, scoped, tag = 'output window, operand 0']
    #allocation8 [shape = 'u8[32768]{0}', space=vmem, size = 0x8000, scoped, tag = 'output window, operand 1']
    #allocation9 [shape = 's32[2]{0}', space=sflag, size = 0x8, scoped, tag = 'scoped memory for ant_gnn_forward.4']
    %9 = vsyncpa [#allocation3], 0
    %s10 = scalar_lea.sflag [#allocation3], 1
    %11 = vsyncpa %s10, 0
    %12 = vsyncpa [#allocation6], 0
    %13 = vsyncpa [#allocation4], 0
    %s14 = scalar_lea.sflag [#allocation4], 1
    %15 = vsyncpa %s14, 0
    %16 = vsyncpa [#allocation9], 0
    %s17 = scalar_lea.sflag [#allocation9], 1
    %18 = vsyncpa %s17, 0
    loop: start=0, step=1, limit=4
    $region2: #{ant_gnn_forward.4} parent=1 // loop_pre_header
      _
    $region3: #{ant_gnn_forward.4} parent=1 // loop_header
      %s20 = sphi 0, %s24
      %p21 = scmp.ge.s32.totalorder %s20, 4
      %s30 = sphi 0, %s32
      %s33 = sphi 0, %s30
      %s34 = sphi 0, %s33
      %s50 = sphi 0, %s34
      %s54 = sphi 0, %s54
      %s56 = sphi 0, %s54
      %s57 = sphi 0, %s56
      %s71 = sphi 0, %s57
      %s77 = sphi 0, %s79
      %s80 = sphi 0, %s77
      %s81 = sphi 0, %s80
      %s97 = sphi 0, %s81
      %s103 = sphi 0, %s105
      %s106 = sphi 0, %s103
      %s107 = sphi 0, %s106
      %s123 = sphi 0, %s107
    $region4: #{ant_gnn_forward.4} parent=1 // loop_header_branch
      %23 = sbr.rel (%p21) target = $region8
    $region5: #{ant_gnn_forward.4} parent=1 // loop_body
      %s25 = ssub.s32 %s20, 1
      %s26 = ssub.s32 %s20, 2
      %s27 = sadd.s32 %s20, 1
      %s28 = ssub.s32 %s20, %s27
      %p29 = scmp.eq.s32.totalorder %s28, 0
      %s31 = sadd.s32 %s30, 1
      %s32 = scalar_select %p29, %s30, %s31
      %p35 = pneg %p29
      %p36 = scmp.eq.s32.totalorder %s20, 1
      %p37 = por %p35, %p36
      %p38 = scmp.ne.s32.totalorder %s30, %s33
      %p39 = scmp.eq.s32.totalorder %s20, 0
      %p40 = por %p38, %p39
      %p41 = scmp.ne.s32.totalorder %s30, %s33
      %p42 = scmp.eq.s32.totalorder %s25, 1
      %p43 = por %p41, %p42
      %p44 = scmp.ne.s32.totalorder %s33, %s34
      %p45 = scmp.eq.s32.totalorder %s25, 0
      %p46 = por %p44, %p45
      %p47 = scmp.ne.s32.totalorder %s33, %s34
      %p48 = scmp.eq.s32.totalorder %s26, 1
      %p49 = por %p47, %p48
      %p51 = scmp.ne.s32.totalorder %s34, %s50
      %p52 = scmp.eq.s32.totalorder %s26, 0
      %p53 = por %p51, %p52
      %s55 = sadd.s32 %s54, 1
      %p58 = scmp.eq.s32.totalorder %s20, 1
      %p59 = scmp.ne.s32.totalorder %s54, %s56
      %p60 = scmp.eq.s32.totalorder %s20, 0
      %p61 = por %p59, %p60
      %p62 = scmp.ne.s32.totalorder %s54, %s56
      %p63 = scmp.eq.s32.totalorder %s25, 1
      %p64 = por %p62, %p63
      %p65 = scmp.ne.s32.totalorder %s56, %s57
      %p66 = scmp.eq.s32.totalorder %s25, 0
      %p67 = por %p65, %p66
      %p68 = scmp.ne.s32.totalorder %s56, %s57
      %p69 = scmp.eq.s32.totalorder %s26, 1
      %p70 = por %p68, %p69
      %p72 = scmp.ne.s32.totalorder %s57, %s71
      %p73 = scmp.eq.s32.totalorder %s26, 0
      %p74 = por %p72, %p73
      %s75 = ssub.s32 %s20, %s27
      %p76 = scmp.eq.s32.totalorder %s75, 0
      %s78 = sadd.s32 %s77, 1
      %s79 = scalar_select %p76, %s77, %s78
      %p82 = pneg %p76
      %p83 = scmp.eq.s32.totalorder %s20, 1
      %p84 = por %p82, %p83
      %p85 = scmp.ne.s32.totalorder %s77, %s80
      %p86 = scmp.eq.s32.totalorder %s20, 0
      %p87 = por %p85, %p86
      %p88 = scmp.ne.s32.totalorder %s77, %s80
      %p89 = scmp.eq.s32.totalorder %s25, 1
      %p90 = por %p88, %p89
      %p91 = scmp.ne.s32.totalorder %s80, %s81
      %p92 = scmp.eq.s32.totalorder %s25, 0
      %p93 = por %p91, %p92
      %p94 = scmp.ne.s32.totalorder %s80, %s81
      %p95 = scmp.eq.s32.totalorder %s26, 1
      %p96 = por %p94, %p95
      %p98 = scmp.ne.s32.totalorder %s81, %s97
      %p99 = scmp.eq.s32.totalorder %s26, 0
      %p100 = por %p98, %p99
      %s101 = ssub.s32 %s20, %s27
      %p102 = scmp.eq.s32.totalorder %s101, 0
      %s104 = sadd.s32 %s103, 1
      %s105 = scalar_select %p102, %s103, %s104
      %p108 = pneg %p102
      %p109 = scmp.eq.s32.totalorder %s20, 1
      %p110 = por %p108, %p109
      %p111 = scmp.ne.s32.totalorder %s103, %s106
      %p112 = scmp.eq.s32.totalorder %s20, 0
      %p113 = por %p111, %p112
      %p114 = scmp.ne.s32.totalorder %s103, %s106
      %p115 = scmp.eq.s32.totalorder %s25, 1
      %p116 = por %p114, %p115
      %p117 = scmp.ne.s32.totalorder %s106, %s107
      %p118 = scmp.eq.s32.totalorder %s25, 0
      %p119 = por %p117, %p118
      %p120 = scmp.ne.s32.totalorder %s106, %s107
      %p121 = scmp.eq.s32.totalorder %s26, 1
      %p122 = por %p120, %p121
      %p124 = scmp.ne.s32.totalorder %s107, %s123
      %p125 = scmp.eq.s32.totalorder %s26, 0
      %p126 = por %p124, %p125
      %p127 = scmp.le.s32.totalorder 1, %s20
      %p128 = scmp.lt.s32.totalorder %s20, 3
      %p129 = pnand %p127, %p128
      %p130 = pneg %p129
      // Predicated region
      $region9: #{ant_gnn_forward.4} parent=5 // pred_check
        _
      $region10: #{ant_gnn_forward.4} parent=5 // pred_check_branch
        %132 = sbr.rel (%p129) target = $region12
      $region11: #{ant_gnn_forward.4} parent=5 // pred_region
        %s133 = ssub.s32 %s20, 1
        // Predicated region
        $region13: #{ant_gnn_forward.4} parent=11 // pred_check
          %p134 = pneg %p67
        $region14: #{ant_gnn_forward.4} parent=11 // pred_check_branch
          %136 = sbr.rel (%p134) target = $region16
        $region15: #{ant_gnn_forward.4} parent=11 // pred_region
          %s138 = ssub.s32 128, 128
          %139 = vsyncadd [#allocation6], %s138
          %s141 = sshll.u32 [#allocation5], 4
          %s142 = int_to_ptr.vmem [resolvable:$true] %s141
          %144 = dma.hbm_to_vmem [thread:$0]  %s1, 128, %s142, [#allocation6]
        $region16: #{ant_gnn_forward.4} parent=11 // pred_fallthru
          _
      $region12: #{ant_gnn_forward.4} parent=5 // pred_fallthru
        _
      %p145 = scmp.lt.s32.totalorder %s20, 2
      // Predicated region
      $region17: #{ant_gnn_forward.4} parent=5 // pred_check
        %p146 = pneg %p145
      $region18: #{ant_gnn_forward.4} parent=5 // pred_check_branch
        %148 = sbr.rel (%p146) target = $region20
      $region19: #{ant_gnn_forward.4} parent=5 // pred_region
        // Predicated region
        $region21: #{ant_gnn_forward.4} parent=19 // pred_check
          %p149 = pneg %p40
        $region22: #{ant_gnn_forward.4} parent=19 // pred_check_branch
          %151 = sbr.rel (%p149) target = $region24
        $region23: #{ant_gnn_forward.4} parent=19 // pred_region
          %s152 = sand.u32 %s30, 1
          %s153 = scalar_lea.sflag [#allocation3], %s152
          %s154 = sand.u32 %s30, 1
          %s155 = smul.addr %s154, 16
          %s156 = scalar_lea.vmem [#allocation2], %s155
          %s157 = smul.u32 4, %s20
          %s159 = ssub.s32 256, 256
          %160 = vsyncadd %s153, %s159
          %s161 = smul.addr %s157, 64
          %s162 = scalar_lea.hbm %s0, %s161
          %s163 = sshll.u32 %s156, 4
          %s164 = int_to_ptr.vmem [resolvable:$true] %s163
          %169 = dma.hbm_to_vmem [thread:$0]  %s162, 256, %s164, %s153, 64, 64, 4
        $region24: #{ant_gnn_forward.4} parent=19 // pred_fallthru
          _
      $region20: #{ant_gnn_forward.4} parent=5 // pred_fallthru
        _
      %p170 = scmp.le.s32.totalorder 1, %s20
      %p171 = scmp.lt.s32.totalorder %s20, 3
      %p172 = pnand %p170, %p171
      %p173 = pneg %p172
      // Predicated region
      $region25: #{ant_gnn_forward.4} parent=5 // pred_check
        _
      $region26: #{ant_gnn_forward.4} parent=5 // pred_check_branch
        %175 = sbr.rel (%p172) target = $region28
      $region27: #{ant_gnn_forward.4} parent=5 // pred_region
        %s176 = ssub.s32 %s20, 1
        %s177 = sand.u32 %s33, 1
        %s178 = scalar_lea.sflag [#allocation3], %s177
        %s179 = sand.u32 %s33, 1
        %s180 = smul.addr %s179, 16
        %s181 = scalar_lea.vmem [#allocation2], %s180
        // Predicated region
        $region29: #{ant_gnn_forward.4} parent=27 // pred_check
          %p182 = pneg %p46
        $region30: #{ant_gnn_forward.4} parent=27 // pred_check_branch
          %184 = sbr.rel (%p182) target = $region32
        $region31: #{ant_gnn_forward.4} parent=27 // pred_region
          %185 = dma.done %s178, 256
        $region32: #{ant_gnn_forward.4} parent=27 // pred_fallthru
          _
        // Predicated region
        $region33: #{ant_gnn_forward.4} parent=27 // pred_check
          %p186 = pneg %p67
        $region34: #{ant_gnn_forward.4} parent=27 // pred_check_branch
          %188 = sbr.rel (%p186) target = $region36
        $region35: #{ant_gnn_forward.4} parent=27 // pred_region
          %189 = dma.done [#allocation6], 128
        $region36: #{ant_gnn_forward.4} parent=27 // pred_fallthru
          _
        %s190 = sand.u32 %s33, 1
        %s191 = scalar_lea.sflag [#allocation3], %s190
        %s192 = sand.u32 %s33, 1
        %s193 = smul.addr %s192, 16
        %s194 = scalar_lea.vmem [#allocation2], %s193
        %p195 = pneg %p46
        %p196 = pneg %p43
        %p197 = pneg %p67
        %p198 = pneg %p64
        %p199 = pneg %p93
        %p200 = pneg %p90
        %s201 = sand.u32 %s80, 1
        %s202 = scalar_lea.sflag [#allocation4], %s201
        %s203 = sand.u32 %s80, 1
        %s204 = smul.addr %s203, 32
        %s205 = scalar_lea.vmem [#allocation7], %s204
        %p206 = pneg %p119
        %p207 = pneg %p116
        %s208 = sand.u32 %s106, 1
        %s209 = scalar_lea.sflag [#allocation9], %s208
        %s210 = sand.u32 %s106, 1
        %s211 = smul.addr %s210, 32
        %s212 = scalar_lea.vmem [#allocation8], %s211
        %s213 = smul.u32 4, %s25
        %s214 = smul.u32 4, %s25
        %s215 = smul.u32 4, %s25
        %v217 = vld [vmem:[%s181] sm:$0xf]
        %v218 = vld [vmem:[%s181 + $0x4] sm:$0xf]
        %v219 = vld [vmem:[%s181 + $0x8] sm:$0xf]
        %v220 = vld [vmem:[%s181 + $0xc] sm:$0xf]
        %v221 = vld [vmem:[#allocation5] sm:$0xff]
        %v226 = vunpack.c.l.b16 %v217
        %v227 = vunpack.c.l.b16 %v218
        %v228 = vunpack.c.l.b16 %v219
        %v229 = vunpack.c.l.b16 %v220
        %v230 = vpack.c.b16 %v227, %v226
        %v231 = vpack.c.b16 %v229, %v228
        %v233 = vunpack.c.l.b16 %v221
        %v234 = vunpack.c.h.b16 %v221
        %v235 = vpack.c.b16 %v233, %v233
        %v236 = vpack.c.b16 %v234, %v234
        %vm237 = vcmask 64512
        %v239 = vsel %vm237, %v230, 0
        %v242 = vsel %vm237, %v231, 0
        %vm244 = vcmask 1043456
        %v246 = vsel %vm244, %v235, 0
        %v249 = vsel %vm244, %v236, 0
        %251 = vmatprep.subr.bf16.mxu0 %v249
        %252 = vmatpush1.bf16.msra.mxu0 %v246
        %253 = vmatprep.subr.bf16.mxu0 0
        %254 = vmatpush1.bf16.msra.mxu0 0
        %255 = vmatprep.subr.bf16.mxu0 0
        %256 = vmatpush1.bf16.msra.mxu0 0
        %257 = vmatprep.subr.bf16.mxu0 0
        %258 = vmatpush1.bf16.msra.mxu0 0
        %259 = vmatprep.subr.bf16.mxu0 0
        %260 = vmatpush1.bf16.msra.mxu0 0
        %261 = vmatprep.subr.bf16.mxu0 0
        %262 = vmatpush1.bf16.msra.mxu0 0
        %263 = vmatprep.subr.bf16.mxu0 0
        %264 = vmatpush1.bf16.msra.mxu0 0
        %265 = vmatprep.subr.bf16.mxu0 0
        %266 = vmatpush1.bf16.msra.mxu0 0
        %267 = vmatprep.subr.bf16.mxu0 0
        %268 = vmatpush1.bf16.msra.mxu0 0
        %269 = vmatprep.subr.bf16.mxu0 0
        %270 = vmatpush1.bf16.msra.mxu0 0
        %271 = vmatprep.subr.bf16.mxu0 0
        %272 = vmatpush1.bf16.msra.mxu0 0
        %273 = vmatprep.subr.bf16.mxu0 0
        %274 = vmatpush1.bf16.msra.mxu0 0
        %275 = vmatprep.subr.bf16.mxu0 0
        %276 = vmatpush1.bf16.msra.mxu0 0
        %277 = vmatprep.subr.bf16.mxu0 0
        %278 = vmatpush1.bf16.msra.mxu0 0
        %279 = vmatprep.subr.bf16.mxu0 0
        %280 = vmatpush1.bf16.msra.mxu0 0
        %281 = vmatprep.subr.bf16.mxu0 0
        %282 = vmatpush1.bf16.msra.mxu0 0
        %283 = vmatprep.mubr.bf16.mxu0 0
        %284 = vmatmul.mubr.bf16.gmra.mrb[0].mxu0 %v239
        %v285 = vpop.f32.mrb[0].mxu0
        %v286 = vadd.f32 0.0, %v285
        %v287 = vpop.f32.mrb[0].mxu0
        %v288 = vadd.f32 0.0, %v287
        %v289 = vpop.f32.mrb[0].mxu0
        %v290 = vadd.f32 0.0, %v289
        %v291 = vpop.f32.mrb[0].mxu0
        %v292 = vadd.f32 0.0, %v291
        %293 = vmatprep.mubr.bf16.mxu0 0
        %294 = vmatmul.mubr.bf16.gmra.mrb[0].mxu0 %v242
        %v295 = vpop.f32.mrb[0].mxu0
        %v296 = vadd.f32 0.0, %v295
        %v297 = vpop.f32.mrb[0].mxu0
        %v298 = vadd.f32 0.0, %v297
        %v299 = vpop.f32.mrb[0].mxu0
        %v300 = vadd.f32 0.0, %v299
        %v301 = vpop.f32.mrb[0].mxu0
        %v302 = vadd.f32 0.0, %v301
        %303 = vdwg.mxu0
        %v304 = vpack.c.bf16 %v290, %v286
        %v305 = vpack.c.bf16 %v300, %v296
        %v308 = vunpack.c.l.b16 %v304
        %v309 = vunpack.c.h.b16 %v304
        %v310 = vunpack.c.l.b16 %v305
        %v311 = vunpack.c.h.b16 %v305
        %v312 = vpack.c.b16 %v308, %v308
        %v313 = vpack.c.b16 %v309, %v309
        %v314 = vpack.c.b16 %v310, %v310
        %v315 = vpack.c.b16 %v311, %v311
        %320 = vst [vmem:[%s205] sm:$0xf] %v312
        %321 = vst [vmem:[%s205 + $0x8] sm:$0xf] %v313
        %322 = vst [vmem:[%s205 + $0x10] sm:$0xf] %v314
        %323 = vst [vmem:[%s205 + $0x18] sm:$0xf] %v315
        %v324 = vlaneseq
        %v325 = vand.u32 %v324, 127
        %vm326 = vcmp.eq.s32.totalorder %v325, 0
        %v327 = vsel %vm326, 1, 0
        %v328 = vcvt.s32.f32 %v327
        %v329 = vpack.c.bf16 %v328, %v328
        %v331 = vunpack.c.l.b16 %v329
        %v332 = vpack.c.b16 %v331, %v331
        %334 = vst [vmem:[%s205 + $0x4] sm:$0xf] %v332
        %335 = vst [vmem:[%s205 + $0xc] sm:$0xf] %v332
        %336 = vst [vmem:[%s205 + $0x14] sm:$0xf] %v332
        %337 = vst [vmem:[%s205 + $0x1c] sm:$0xf] %v332
        %338 = vst [vmem:[%s212] sm:$0xff] %v288
        %339 = vst [vmem:[%s212 + $0x8] sm:$0xff] %v292
        %340 = vst [vmem:[%s212 + $0x10] sm:$0xff] %v298
        %341 = vst [vmem:[%s212 + $0x18] sm:$0xff] %v302
        %s342 = sand.u32 %s80, 1
        %s343 = scalar_lea.sflag [#allocation4], %s342
        %s344 = sand.u32 %s80, 1
        %s345 = smul.addr %s344, 32
        %s346 = scalar_lea.vmem [#allocation7], %s345
        %s347 = sand.u32 %s106, 1
        %s348 = scalar_lea.sflag [#allocation9], %s347
        %s349 = sand.u32 %s106, 1
        %s350 = smul.addr %s349, 32
        %s351 = scalar_lea.vmem [#allocation8], %s350
        // Predicated region
        $region37: #{ant_gnn_forward.4} parent=27 // pred_check
          %p352 = pneg %p90
        $region38: #{ant_gnn_forward.4} parent=27 // pred_check_branch
          %354 = sbr.rel (%p352) target = $region40
        $region39: #{ant_gnn_forward.4} parent=27 // pred_region
          %s355 = smul.u32 4, %s25
          %s357 = ssub.s32 512, 512
          %358 = vsyncadd %s343, %s357
          %s359 = smul.addr %s355, 2
          %s360 = smul.addr %s359, 64
          %s361 = scalar_lea.hbm %s2, %s360
          %s362 = sshll.u32 %s346, 4
          %s363 = int_to_ptr.vmem [resolvable:$true] %s362
          %368 = dma.vmem_to_hbm [thread:$0]  %s363, 512, %s361, %s343, 128, 128, 8
        $region40: #{ant_gnn_forward.4} parent=27 // pred_fallthru
          _
        // Predicated region
        $region41: #{ant_gnn_forward.4} parent=27 // pred_check
          %p369 = pneg %p116
        $region42: #{ant_gnn_forward.4} parent=27 // pred_check_branch
          %371 = sbr.rel (%p369) target = $region44
        $region43: #{ant_gnn_forward.4} parent=27 // pred_region
          %s372 = smul.u32 4, %s25
          %s374 = ssub.s32 512, 512
          %375 = vsyncadd %s348, %s374
          %s376 = smul.addr %s372, 128
          %s377 = scalar_lea.hbm %s3, %s376
          %s378 = sshll.u32 %s351, 4
          %s379 = int_to_ptr.vmem [resolvable:$true] %s378
          %384 = dma.vmem_to_hbm [thread:$0]  %s379, 512, %s377, %s348, 128, 128, 8
        $region44: #{ant_gnn_forward.4} parent=27 // pred_fallthru
          _
      $region28: #{ant_gnn_forward.4} parent=5 // pred_fallthru
        _
      %p385 = scmp.le.s32.totalorder 2, %s20
      // Predicated region
      $region45: #{ant_gnn_forward.4} parent=5 // pred_check
        %p386 = pneg %p385
      $region46: #{ant_gnn_forward.4} parent=5 // pred_check_branch
        %388 = sbr.rel (%p386) target = $region48
      $region47: #{ant_gnn_forward.4} parent=5 // pred_region
        %s389 = ssub.s32 %s20, 2
        // Predicated region
        $region49: #{ant_gnn_forward.4} parent=47 // pred_check
          %p390 = pneg %p96
        $region50: #{ant_gnn_forward.4} parent=47 // pred_check_branch
          %392 = sbr.rel (%p390) target = $region52
        $region51: #{ant_gnn_forward.4} parent=47 // pred_region
          %s393 = sand.u32 %s81, 1
          %s394 = scalar_lea.sflag [#allocation4], %s393
          %s395 = sand.u32 %s81, 1
          %s396 = smul.addr %s395, 32
          %s397 = scalar_lea.vmem [#allocation7], %s396
          %398 = dma.done %s394, 512
        $region52: #{ant_gnn_forward.4} parent=47 // pred_fallthru
          _
        // Predicated region
        $region53: #{ant_gnn_forward.4} parent=47 // pred_check
          %p399 = pneg %p122
        $region54: #{ant_gnn_forward.4} parent=47 // pred_check_branch
          %401 = sbr.rel (%p399) target = $region56
        $region55: #{ant_gnn_forward.4} parent=47 // pred_region
          %s402 = sand.u32 %s107, 1
          %s403 = scalar_lea.sflag [#allocation9], %s402
          %s404 = sand.u32 %s107, 1
          %s405 = smul.addr %s404, 32
          %s406 = scalar_lea.vmem [#allocation8], %s405
          %407 = dma.done %s403, 512
        $region56: #{ant_gnn_forward.4} parent=47 // pred_fallthru
          _
      $region48: #{ant_gnn_forward.4} parent=5 // pred_fallthru
        _
    $region6: #{ant_gnn_forward.4} parent=1 // loop_footer
      %s24 = sadd.s32 1, %s20
    $region7: #{ant_gnn_forward.4} parent=1 // loop_footer_branch
      %19 = sbr.rel target = $region3
    $region8: #{ant_gnn_forward.4} parent=1 // loop_exit
      _
    %408 = vsyncpa [#allocation3], 1
    %s409 = scalar_lea.sflag [#allocation3], 1
    %410 = vsyncpa %s409, 1
    %411 = vsyncpa [#allocation6], 1
    %412 = vsyncpa [#allocation4], 1
    %s413 = scalar_lea.sflag [#allocation4], 1
    %414 = vsyncpa %s413, 1
    %415 = vsyncpa [#allocation9], 1
    %s416 = scalar_lea.sflag [#allocation9], 1
    %417 = vsyncpa %s416, 1

// kernel: ant_gnn_forward.6
$region0: #{ant_gnn_forward.6}
  #allocation0 [shape = 'u32[]', space=smem, size = 0x4, offset = 0x4, fixed_abs, tag = 'smem constant byte address 0x4 - core index']
  #allocation1 [shape = 'u32[144,128]{1,0:T(1,128)}', space=vmem, size = 0x12000, scoped, tag = 'internal scratch']
  %s0 = inlined_call_operand.hbm [shape: bf16[64,128], index: 0, kind: input, shape index: {}]
  %s1 = inlined_call_operand.hbm [shape: bf16[128,256], index: 1, kind: input, shape index: {}]
  %s2 = inlined_call_operand.hbm [shape: bf16[64,256], index: 2, kind: output, shape index: {0}]
  %s3 = inlined_call_operand.hbm [shape: f32[64,128], index: 3, kind: output, shape index: {1}]
  %4 = xla_tuple %s2, %s3
  %s5 = sld [smem:[#allocation0]]
  $region57: #{ant_gnn_forward.6} parent=0
    _
  %s7 = ssub.s32 1, %s5
  %s8 = scalar_select 0, %s7, %s5
  $region1: #{ant_gnn_forward.6} parent=0
    #allocation2 [shape = 'u8[16384]{0}', space=vmem, size = 0x4000, scoped, tag = 'input window, operand 0']
    #allocation3 [shape = 's32[2]{0}', space=sflag, size = 0x8, scoped, tag = 'scoped memory for ant_gnn_forward.6']
    #allocation4 [shape = 's32[2]{0}', space=sflag, size = 0x8, scoped, tag = 'scoped memory for ant_gnn_forward.6']
    #allocation5 [shape = 'u8[65536]{0}', space=vmem, size = 0x10000, scoped, tag = 'input window, operand 1, single buffered']
    #allocation6 [shape = 's32[1]{0}', space=sflag, size = 0x4, scoped, tag = 'scoped memory for ant_gnn_forward.6']
    #allocation7 [shape = 'u8[32768]{0}', space=vmem, size = 0x8000, scoped, tag = 'output window, operand 0']
    #allocation8 [shape = 'u8[32768]{0}', space=vmem, size = 0x8000, scoped, tag = 'output window, operand 1']
    #allocation9 [shape = 's32[2]{0}', space=sflag, size = 0x8, scoped, tag = 'scoped memory for ant_gnn_forward.6']
    %9 = vsyncpa [#allocation3], 0
    %s10 = scalar_lea.sflag [#allocation3], 1
    %11 = vsyncpa %s10, 0
    %12 = vsyncpa [#allocation6], 0
    %13 = vsyncpa [#allocation4], 0
    %s14 = scalar_lea.sflag [#allocation4], 1
    %15 = vsyncpa %s14, 0
    %16 = vsyncpa [#allocation9], 0
    %s17 = scalar_lea.sflag [#allocation9], 1
    %18 = vsyncpa %s17, 0
    loop: start=0, step=1, limit=4
    $region2: #{ant_gnn_forward.6} parent=1 // loop_pre_header
      _
    $region3: #{ant_gnn_forward.6} parent=1 // loop_header
      %s20 = sphi 0, %s24
      %p21 = scmp.ge.s32.totalorder %s20, 4
      %s30 = sphi 0, %s32
      %s33 = sphi 0, %s30
      %s34 = sphi 0, %s33
      %s50 = sphi 0, %s34
      %s54 = sphi 0, %s54
      %s56 = sphi 0, %s54
      %s57 = sphi 0, %s56
      %s71 = sphi 0, %s57
      %s77 = sphi 0, %s79
      %s80 = sphi 0, %s77
      %s81 = sphi 0, %s80
      %s97 = sphi 0, %s81
      %s103 = sphi 0, %s105
      %s106 = sphi 0, %s103
      %s107 = sphi 0, %s106
      %s123 = sphi 0, %s107
    $region4: #{ant_gnn_forward.6} parent=1 // loop_header_branch
      %23 = sbr.rel (%p21) target = $region8
    $region5: #{ant_gnn_forward.6} parent=1 // loop_body
      %s25 = ssub.s32 %s20, 1
      %s26 = ssub.s32 %s20, 2
      %s27 = sadd.s32 %s20, 1
      %s28 = ssub.s32 %s20, %s27
      %p29 = scmp.eq.s32.totalorder %s28, 0
      %s31 = sadd.s32 %s30, 1
      %s32 = scalar_select %p29, %s30, %s31
      %p35 = pneg %p29
      %p36 = scmp.eq.s32.totalorder %s20, 1
      %p37 = por %p35, %p36
      %p38 = scmp.ne.s32.totalorder %s30, %s33
      %p39 = scmp.eq.s32.totalorder %s20, 0
      %p40 = por %p38, %p39
      %p41 = scmp.ne.s32.totalorder %s30, %s33
      %p42 = scmp.eq.s32.totalorder %s25, 1
      %p43 = por %p41, %p42
      %p44 = scmp.ne.s32.totalorder %s33, %s34
      %p45 = scmp.eq.s32.totalorder %s25, 0
      %p46 = por %p44, %p45
      %p47 = scmp.ne.s32.totalorder %s33, %s34
      %p48 = scmp.eq.s32.totalorder %s26, 1
      %p49 = por %p47, %p48
      %p51 = scmp.ne.s32.totalorder %s34, %s50
      %p52 = scmp.eq.s32.totalorder %s26, 0
      %p53 = por %p51, %p52
      %s55 = sadd.s32 %s54, 1
      %p58 = scmp.eq.s32.totalorder %s20, 1
      %p59 = scmp.ne.s32.totalorder %s54, %s56
      %p60 = scmp.eq.s32.totalorder %s20, 0
      %p61 = por %p59, %p60
      %p62 = scmp.ne.s32.totalorder %s54, %s56
      %p63 = scmp.eq.s32.totalorder %s25, 1
      %p64 = por %p62, %p63
      %p65 = scmp.ne.s32.totalorder %s56, %s57
      %p66 = scmp.eq.s32.totalorder %s25, 0
      %p67 = por %p65, %p66
      %p68 = scmp.ne.s32.totalorder %s56, %s57
      %p69 = scmp.eq.s32.totalorder %s26, 1
      %p70 = por %p68, %p69
      %p72 = scmp.ne.s32.totalorder %s57, %s71
      %p73 = scmp.eq.s32.totalorder %s26, 0
      %p74 = por %p72, %p73
      %s75 = ssub.s32 %s20, %s27
      %p76 = scmp.eq.s32.totalorder %s75, 0
      %s78 = sadd.s32 %s77, 1
      %s79 = scalar_select %p76, %s77, %s78
      %p82 = pneg %p76
      %p83 = scmp.eq.s32.totalorder %s20, 1
      %p84 = por %p82, %p83
      %p85 = scmp.ne.s32.totalorder %s77, %s80
      %p86 = scmp.eq.s32.totalorder %s20, 0
      %p87 = por %p85, %p86
      %p88 = scmp.ne.s32.totalorder %s77, %s80
      %p89 = scmp.eq.s32.totalorder %s25, 1
      %p90 = por %p88, %p89
      %p91 = scmp.ne.s32.totalorder %s80, %s81
      %p92 = scmp.eq.s32.totalorder %s25, 0
      %p93 = por %p91, %p92
      %p94 = scmp.ne.s32.totalorder %s80, %s81
      %p95 = scmp.eq.s32.totalorder %s26, 1
      %p96 = por %p94, %p95
      %p98 = scmp.ne.s32.totalorder %s81, %s97
      %p99 = scmp.eq.s32.totalorder %s26, 0
      %p100 = por %p98, %p99
      %s101 = ssub.s32 %s20, %s27
      %p102 = scmp.eq.s32.totalorder %s101, 0
      %s104 = sadd.s32 %s103, 1
      %s105 = scalar_select %p102, %s103, %s104
      %p108 = pneg %p102
      %p109 = scmp.eq.s32.totalorder %s20, 1
      %p110 = por %p108, %p109
      %p111 = scmp.ne.s32.totalorder %s103, %s106
      %p112 = scmp.eq.s32.totalorder %s20, 0
      %p113 = por %p111, %p112
      %p114 = scmp.ne.s32.totalorder %s103, %s106
      %p115 = scmp.eq.s32.totalorder %s25, 1
      %p116 = por %p114, %p115
      %p117 = scmp.ne.s32.totalorder %s106, %s107
      %p118 = scmp.eq.s32.totalorder %s25, 0
      %p119 = por %p117, %p118
      %p120 = scmp.ne.s32.totalorder %s106, %s107
      %p121 = scmp.eq.s32.totalorder %s26, 1
      %p122 = por %p120, %p121
      %p124 = scmp.ne.s32.totalorder %s107, %s123
      %p125 = scmp.eq.s32.totalorder %s26, 0
      %p126 = por %p124, %p125
      %p127 = scmp.le.s32.totalorder 1, %s20
      %p128 = scmp.lt.s32.totalorder %s20, 3
      %p129 = pnand %p127, %p128
      %p130 = pneg %p129
      // Predicated region
      $region9: #{ant_gnn_forward.6} parent=5 // pred_check
        _
      $region10: #{ant_gnn_forward.6} parent=5 // pred_check_branch
        %132 = sbr.rel (%p129) target = $region12
      $region11: #{ant_gnn_forward.6} parent=5 // pred_region
        %s133 = ssub.s32 %s20, 1
        // Predicated region
        $region13: #{ant_gnn_forward.6} parent=11 // pred_check
          %p134 = pneg %p67
        $region14: #{ant_gnn_forward.6} parent=11 // pred_check_branch
          %136 = sbr.rel (%p134) target = $region16
        $region15: #{ant_gnn_forward.6} parent=11 // pred_region
          %s138 = ssub.s32 2048, 2048
          %139 = vsyncadd [#allocation6], %s138
          %s140 = sshll.u32 [#allocation5], 4
          %s141 = int_to_ptr.vmem [resolvable:$true] %s140
          %146 = dma.hbm_to_vmem [thread:$0]  %s1, 2048, %s141, [#allocation6], 128, 128, 8
        $region16: #{ant_gnn_forward.6} parent=11 // pred_fallthru
          _
      $region12: #{ant_gnn_forward.6} parent=5 // pred_fallthru
        _
      %p147 = scmp.lt.s32.totalorder %s20, 2
      // Predicated region
      $region17: #{ant_gnn_forward.6} parent=5 // pred_check
        %p148 = pneg %p147
      $region18: #{ant_gnn_forward.6} parent=5 // pred_check_branch
        %150 = sbr.rel (%p148) target = $region20
      $region19: #{ant_gnn_forward.6} parent=5 // pred_region
        // Predicated region
        $region21: #{ant_gnn_forward.6} parent=19 // pred_check
          %p151 = pneg %p40
        $region22: #{ant_gnn_forward.6} parent=19 // pred_check_branch
          %153 = sbr.rel (%p151) target = $region24
        $region23: #{ant_gnn_forward.6} parent=19 // pred_region
          %s154 = sand.u32 %s30, 1
          %s155 = scalar_lea.sflag [#allocation3], %s154
          %s156 = sand.u32 %s30, 1
          %s157 = smul.addr %s156, 16
          %s158 = scalar_lea.vmem [#allocation2], %s157
          %s159 = smul.u32 4, %s20
          %s161 = ssub.s32 256, 256
          %162 = vsyncadd %s155, %s161
          %s163 = smul.addr %s159, 64
          %s164 = scalar_lea.hbm %s0, %s163
          %s165 = sshll.u32 %s158, 4
          %s166 = int_to_ptr.vmem [resolvable:$true] %s165
          %171 = dma.hbm_to_vmem [thread:$0]  %s164, 256, %s166, %s155, 64, 64, 4
        $region24: #{ant_gnn_forward.6} parent=19 // pred_fallthru
          _
      $region20: #{ant_gnn_forward.6} parent=5 // pred_fallthru
        _
      %p172 = scmp.le.s32.totalorder 1, %s20
      %p173 = scmp.lt.s32.totalorder %s20, 3
      %p174 = pnand %p172, %p173
      %p175 = pneg %p174
      // Predicated region
      $region25: #{ant_gnn_forward.6} parent=5 // pred_check
        _
      $region26: #{ant_gnn_forward.6} parent=5 // pred_check_branch
        %177 = sbr.rel (%p174) target = $region28
      $region27: #{ant_gnn_forward.6} parent=5 // pred_region
        %s178 = ssub.s32 %s20, 1
        %s179 = sand.u32 %s33, 1
        %s180 = scalar_lea.sflag [#allocation3], %s179
        %s181 = sand.u32 %s33, 1
        %s182 = smul.addr %s181, 16
        %s183 = scalar_lea.vmem [#allocation2], %s182
        // Predicated region
        $region29: #{ant_gnn_forward.6} parent=27 // pred_check
          %p184 = pneg %p46
        $region30: #{ant_gnn_forward.6} parent=27 // pred_check_branch
          %186 = sbr.rel (%p184) target = $region32
        $region31: #{ant_gnn_forward.6} parent=27 // pred_region
          %187 = dma.done %s180, 256
        $region32: #{ant_gnn_forward.6} parent=27 // pred_fallthru
          _
        // Predicated region
        $region33: #{ant_gnn_forward.6} parent=27 // pred_check
          %p188 = pneg %p67
        $region34: #{ant_gnn_forward.6} parent=27 // pred_check_branch
          %190 = sbr.rel (%p188) target = $region36
        $region35: #{ant_gnn_forward.6} parent=27 // pred_region
          %191 = dma.done [#allocation6], 2048
        $region36: #{ant_gnn_forward.6} parent=27 // pred_fallthru
          _
        %s192 = sand.u32 %s33, 1
        %s193 = scalar_lea.sflag [#allocation3], %s192
        %s194 = sand.u32 %s33, 1
        %s195 = smul.addr %s194, 16
        %s196 = scalar_lea.vmem [#allocation2], %s195
        %p197 = pneg %p46
        %p198 = pneg %p43
        %p199 = pneg %p67
        %p200 = pneg %p64
        %p201 = pneg %p93
        %p202 = pneg %p90
        %s203 = sand.u32 %s80, 1
        %s204 = scalar_lea.sflag [#allocation4], %s203
        %s205 = sand.u32 %s80, 1
        %s206 = smul.addr %s205, 32
        %s207 = scalar_lea.vmem [#allocation7], %s206
        %p208 = pneg %p119
        %p209 = pneg %p116
        %s210 = sand.u32 %s106, 1
        %s211 = scalar_lea.sflag [#allocation9], %s210
        %s212 = sand.u32 %s106, 1
        %s213 = smul.addr %s212, 32
        %s214 = scalar_lea.vmem [#allocation8], %s213
        %s215 = smul.u32 4, %s25
        %s216 = smul.u32 4, %s25
        %s217 = smul.u32 4, %s25
        %v219 = vld [vmem:[%s183] sm:$0xf]
        %v220 = vld [vmem:[%s183 + $0x4] sm:$0xf]
        %v221 = vld [vmem:[%s183 + $0x8] sm:$0xf]
        %v222 = vld [vmem:[%s183 + $0xc] sm:$0xf]
        %v223 = vld [vmem:[#allocation5] sm:$0xff]
        %v224 = vld [vmem:[#allocation5 + $0x8] sm:$0xff]
        %v225 = vld [vmem:[#allocation5 + $0x10] sm:$0xff]
        %v226 = vld [vmem:[#allocation5 + $0x18] sm:$0xff]
        %v227 = vld [vmem:[#allocation5 + $0x20] sm:$0xff]
        %v228 = vld [vmem:[#allocation5 + $0x28] sm:$0xff]
        %v229 = vld [vmem:[#allocation5 + $0x30] sm:$0xff]
        %v230 = vld [vmem:[#allocation5 + $0x38] sm:$0xff]
        %v231 = vld [vmem:[#allocation5 + $0x40] sm:$0xff]
        %v232 = vld [vmem:[#allocation5 + $0x48] sm:$0xff]
        %v233 = vld [vmem:[#allocation5 + $0x50] sm:$0xff]
        %v234 = vld [vmem:[#allocation5 + $0x58] sm:$0xff]
        %v235 = vld [vmem:[#allocation5 + $0x60] sm:$0xff]
        %v236 = vld [vmem:[#allocation5 + $0x68] sm:$0xff]
        %v237 = vld [vmem:[#allocation5 + $0x70] sm:$0xff]
        %v238 = vld [vmem:[#allocation5 + $0x78] sm:$0xff]
        %v243 = vunpack.c.l.b16 %v219
        %v244 = vunpack.c.l.b16 %v220
        %v245 = vunpack.c.l.b16 %v221
        %v246 = vunpack.c.l.b16 %v222
        %v247 = vpack.c.b16 %v244, %v243
        %v248 = vpack.c.b16 %v246, %v245
        %v267 = vunpack.c.l.b16 %v223
        %v268 = vunpack.c.h.b16 %v223
        %v269 = vunpack.c.l.b16 %v224
        %v270 = vunpack.c.h.b16 %v224
        %v271 = vunpack.c.l.b16 %v225
        %v272 = vunpack.c.h.b16 %v225
        %v273 = vunpack.c.l.b16 %v226
        %v274 = vunpack.c.h.b16 %v226
        %v275 = vunpack.c.l.b16 %v227
        %v276 = vunpack.c.h.b16 %v227
        %v277 = vunpack.c.l.b16 %v228
        %v278 = vunpack.c.h.b16 %v228
        %v279 = vunpack.c.l.b16 %v229
        %v280 = vunpack.c.h.b16 %v229
        %v281 = vunpack.c.l.b16 %v230
        %v282 = vunpack.c.h.b16 %v230
        %v283 = vunpack.c.l.b16 %v231
        %v284 = vunpack.c.h.b16 %v231
        %v285 = vunpack.c.l.b16 %v232
        %v286 = vunpack.c.h.b16 %v232
        %v287 = vunpack.c.l.b16 %v233
        %v288 = vunpack.c.h.b16 %v233
        %v289 = vunpack.c.l.b16 %v234
        %v290 = vunpack.c.h.b16 %v234
        %v291 = vunpack.c.l.b16 %v235
        %v292 = vunpack.c.h.b16 %v235
        %v293 = vunpack.c.l.b16 %v236
        %v294 = vunpack.c.h.b16 %v236
        %v295 = vunpack.c.l.b16 %v237
        %v296 = vunpack.c.h.b16 %v237
        %v297 = vunpack.c.l.b16 %v238
        %v298 = vunpack.c.h.b16 %v238
        %v299 = vpack.c.b16 %v269, %v267
        %v300 = vpack.c.b16 %v270, %v268
        %v301 = vpack.c.b16 %v273, %v271
        %v302 = vpack.c.b16 %v274, %v272
        %v303 = vpack.c.b16 %v277, %v275
        %v304 = vpack.c.b16 %v278, %v276
        %v305 = vpack.c.b16 %v281, %v279
        %v306 = vpack.c.b16 %v282, %v280
        %v307 = vpack.c.b16 %v285, %v283
        %v308 = vpack.c.b16 %v286, %v284
        %v309 = vpack.c.b16 %v289, %v287
        %v310 = vpack.c.b16 %v290, %v288
        %v311 = vpack.c.b16 %v293, %v291
        %v312 = vpack.c.b16 %v294, %v292
        %v313 = vpack.c.b16 %v297, %v295
        %v314 = vpack.c.b16 %v298, %v296
        %331 = vmatprep.subr.bf16.mxu0 %v300
        %332 = vmatpush1.bf16.msra.mxu0 %v299
        %333 = vmatprep.subr.bf16.mxu0 %v302
        %334 = vmatpush1.bf16.msra.mxu0 %v301
        %335 = vmatprep.subr.bf16.mxu0 %v304
        %336 = vmatpush1.bf16.msra.mxu0 %v303
        %337 = vmatprep.subr.bf16.mxu0 %v306
        %338 = vmatpush1.bf16.msra.mxu0 %v305
        %339 = vmatprep.subr.bf16.mxu0 %v308
        %340 = vmatpush1.bf16.msra.mxu0 %v307
        %341 = vmatprep.subr.bf16.mxu0 %v310
        %342 = vmatpush1.bf16.msra.mxu0 %v309
        %343 = vmatprep.subr.bf16.mxu0 %v312
        %344 = vmatpush1.bf16.msra.mxu0 %v311
        %345 = vmatprep.subr.bf16.mxu0 %v314
        %346 = vmatpush1.bf16.msra.mxu0 %v313
        %347 = vmatprep.subr.bf16.mxu0 0
        %348 = vmatpush1.bf16.msra.mxu0 0
        %349 = vmatprep.subr.bf16.mxu0 0
        %350 = vmatpush1.bf16.msra.mxu0 0
        %351 = vmatprep.subr.bf16.mxu0 0
        %352 = vmatpush1.bf16.msra.mxu0 0
        %353 = vmatprep.subr.bf16.mxu0 0
        %354 = vmatpush1.bf16.msra.mxu0 0
        %355 = vmatprep.subr.bf16.mxu0 0
        %356 = vmatpush1.bf16.msra.mxu0 0
        %357 = vmatprep.subr.bf16.mxu0 0
        %358 = vmatpush1.bf16.msra.mxu0 0
        %359 = vmatprep.subr.bf16.mxu0 0
        %360 = vmatpush1.bf16.msra.mxu0 0
        %361 = vmatprep.subr.bf16.mxu0 0
        %362 = vmatpush1.bf16.msra.mxu0 0
        %363 = vmatprep.mubr.bf16.mxu0 0
        %364 = vmatmul.mubr.bf16.gmra.mrb[0].mxu0 %v247
        %v365 = vpop.f32.mrb[0].mxu0
        %v366 = vadd.f32 0.0, %v365
        %v367 = vpop.f32.mrb[0].mxu0
        %v368 = vadd.f32 0.0, %v367
        %v369 = vpop.f32.mrb[0].mxu0
        %v370 = vadd.f32 0.0, %v369
        %v371 = vpop.f32.mrb[0].mxu0
        %v372 = vadd.f32 0.0, %v371
        %373 = vmatprep.mubr.bf16.mxu0 0
        %374 = vmatmul.mubr.bf16.gmra.mrb[0].mxu0 %v248
        %v375 = vpop.f32.mrb[0].mxu0
        %v376 = vadd.f32 0.0, %v375
        %v377 = vpop.f32.mrb[0].mxu0
        %v378 = vadd.f32 0.0, %v377
        %v379 = vpop.f32.mrb[0].mxu0
        %v380 = vadd.f32 0.0, %v379
        %v381 = vpop.f32.mrb[0].mxu0
        %v382 = vadd.f32 0.0, %v381
        %383 = vdwg.mxu0
        %v384 = vpack.c.bf16 %v370, %v366
        %v385 = vpack.c.bf16 %v380, %v376
        %v388 = vunpack.c.l.b16 %v384
        %v389 = vunpack.c.h.b16 %v384
        %v390 = vunpack.c.l.b16 %v385
        %v391 = vunpack.c.h.b16 %v385
        %v392 = vpack.c.b16 %v388, %v388
        %v393 = vpack.c.b16 %v389, %v389
        %v394 = vpack.c.b16 %v390, %v390
        %v395 = vpack.c.b16 %v391, %v391
        %400 = vst [vmem:[%s207] sm:$0xf] %v392
        %401 = vst [vmem:[%s207 + $0x8] sm:$0xf] %v393
        %402 = vst [vmem:[%s207 + $0x10] sm:$0xf] %v394
        %403 = vst [vmem:[%s207 + $0x18] sm:$0xf] %v395
        %v404 = vlaneseq
        %v405 = vand.u32 %v404, 127
        %vm406 = vcmp.eq.s32.totalorder %v405, 0
        %v407 = vsel %vm406, 1, 0
        %v408 = vcvt.s32.f32 %v407
        %v409 = vpack.c.bf16 %v408, %v408
        %v411 = vunpack.c.l.b16 %v409
        %v412 = vpack.c.b16 %v411, %v411
        %414 = vst [vmem:[%s207 + $0x4] sm:$0xf] %v412
        %415 = vst [vmem:[%s207 + $0xc] sm:$0xf] %v412
        %416 = vst [vmem:[%s207 + $0x14] sm:$0xf] %v412
        %417 = vst [vmem:[%s207 + $0x1c] sm:$0xf] %v412
        %418 = vst [vmem:[%s214] sm:$0xff] %v368
        %419 = vst [vmem:[%s214 + $0x8] sm:$0xff] %v372
        %420 = vst [vmem:[%s214 + $0x10] sm:$0xff] %v378
        %421 = vst [vmem:[%s214 + $0x18] sm:$0xff] %v382
        %s422 = sand.u32 %s80, 1
        %s423 = scalar_lea.sflag [#allocation4], %s422
        %s424 = sand.u32 %s80, 1
        %s425 = smul.addr %s424, 32
        %s426 = scalar_lea.vmem [#allocation7], %s425
        %s427 = sand.u32 %s106, 1
        %s428 = scalar_lea.sflag [#allocation9], %s427
        %s429 = sand.u32 %s106, 1
        %s430 = smul.addr %s429, 32
        %s431 = scalar_lea.vmem [#allocation8], %s430
        // Predicated region
        $region37: #{ant_gnn_forward.6} parent=27 // pred_check
          %p432 = pneg %p90
        $region38: #{ant_gnn_forward.6} parent=27 // pred_check_branch
          %434 = sbr.rel (%p432) target = $region40
        $region39: #{ant_gnn_forward.6} parent=27 // pred_region
          %s435 = smul.u32 4, %s25
          %s437 = ssub.s32 512, 512
          %438 = vsyncadd %s423, %s437
          %s439 = smul.addr %s435, 2
          %s440 = smul.addr %s439, 64
          %s441 = scalar_lea.hbm %s2, %s440
          %s442 = sshll.u32 %s426, 4
          %s443 = int_to_ptr.vmem [resolvable:$true] %s442
          %448 = dma.vmem_to_hbm [thread:$0]  %s443, 512, %s441, %s423, 128, 128, 8
        $region40: #{ant_gnn_forward.6} parent=27 // pred_fallthru
          _
        // Predicated region
        $region41: #{ant_gnn_forward.6} parent=27 // pred_check
          %p449 = pneg %p116
        $region42: #{ant_gnn_forward.6} parent=27 // pred_check_branch
          %451 = sbr.rel (%p449) target = $region44
        $region43: #{ant_gnn_forward.6} parent=27 // pred_region
          %s452 = smul.u32 4, %s25
          %s454 = ssub.s32 512, 512
          %455 = vsyncadd %s428, %s454
          %s456 = smul.addr %s452, 128
          %s457 = scalar_lea.hbm %s3, %s456
          %s458 = sshll.u32 %s431, 4
          %s459 = int_to_ptr.vmem [resolvable:$true] %s458
          %464 = dma.vmem_to_hbm [thread:$0]  %s459, 512, %s457, %s428, 128, 128, 8
        $region44: #{ant_gnn_forward.6} parent=27 // pred_fallthru
          _
      $region28: #{ant_gnn_forward.6} parent=5 // pred_fallthru
        _
      %p465 = scmp.le.s32.totalorder 2, %s20
      // Predicated region
      $region45: #{ant_gnn_forward.6} parent=5 // pred_check
        %p466 = pneg %p465
      $region46: #{ant_gnn_forward.6} parent=5 // pred_check_branch
        %468 = sbr.rel (%p466) target = $region48
      $region47: #{ant_gnn_forward.6} parent=5 // pred_region
        %s469 = ssub.s32 %s20, 2
        // Predicated region
        $region49: #{ant_gnn_forward.6} parent=47 // pred_check
          %p470 = pneg %p96
        $region50: #{ant_gnn_forward.6} parent=47 // pred_check_branch
          %472 = sbr.rel (%p470) target = $region52
        $region51: #{ant_gnn_forward.6} parent=47 // pred_region
          %s473 = sand.u32 %s81, 1
          %s474 = scalar_lea.sflag [#allocation4], %s473
          %s475 = sand.u32 %s81, 1
          %s476 = smul.addr %s475, 32
          %s477 = scalar_lea.vmem [#allocation7], %s476
          %478 = dma.done %s474, 512
        $region52: #{ant_gnn_forward.6} parent=47 // pred_fallthru
          _
        // Predicated region
        $region53: #{ant_gnn_forward.6} parent=47 // pred_check
          %p479 = pneg %p122
        $region54: #{ant_gnn_forward.6} parent=47 // pred_check_branch
          %481 = sbr.rel (%p479) target = $region56
        $region55: #{ant_gnn_forward.6} parent=47 // pred_region
          %s482 = sand.u32 %s107, 1
          %s483 = scalar_lea.sflag [#allocation9], %s482
          %s484 = sand.u32 %s107, 1
          %s485 = smul.addr %s484, 32
          %s486 = scalar_lea.vmem [#allocation8], %s485
          %487 = dma.done %s483, 512
        $region56: #{ant_gnn_forward.6} parent=47 // pred_fallthru
          _
      $region48: #{ant_gnn_forward.6} parent=5 // pred_fallthru
        _
    $region6: #{ant_gnn_forward.6} parent=1 // loop_footer
      %s24 = sadd.s32 1, %s20
    $region7: #{ant_gnn_forward.6} parent=1 // loop_footer_branch
      %19 = sbr.rel target = $region3
    $region8: #{ant_gnn_forward.6} parent=1 // loop_exit
      _
    %488 = vsyncpa [#allocation3], 1
    %s489 = scalar_lea.sflag [#allocation3], 1
    %490 = vsyncpa %s489, 1
    %491 = vsyncpa [#allocation6], 1
    %492 = vsyncpa [#allocation4], 1
    %s493 = scalar_lea.sflag [#allocation4], 1
    %494 = vsyncpa %s493, 1
    %495 = vsyncpa [#allocation9], 1
    %s496 = scalar_lea.sflag [#allocation9], 1
    %497 = vsyncpa %s496, 1

// kernel: ant_gnn_forward.7
$region0: #{ant_gnn_forward.7}
  #allocation0 [shape = 'u32[]', space=smem, size = 0x4, offset = 0x4, fixed_abs, tag = 'smem constant byte address 0x4 - core index']
  #allocation1 [shape = 'u32[144,128]{1,0:T(1,128)}', space=vmem, size = 0x12000, scoped, tag = 'internal scratch']
  %s0 = inlined_call_operand.hbm [shape: bf16[64,256], index: 0, kind: input, shape index: {}]
  %s1 = inlined_call_operand.hbm [shape: f32[1,64], index: 1, kind: input, shape index: {}]
  %s2 = inlined_call_operand.hbm [shape: f32[64,1], index: 2, kind: input, shape index: {}]
  %s3 = inlined_call_operand.hbm [shape: bf16[64,64], index: 3, kind: input, shape index: {}]
  %s4 = inlined_call_operand.hbm [shape: f32[1,128], index: 4, kind: input, shape index: {}]
  %s5 = inlined_call_operand.hbm [shape: f32[64,128], index: 5, kind: output, shape index: {}]
  %s6 = sld [smem:[#allocation0]]
  $region73: #{ant_gnn_forward.7} parent=0
    _
  %s8 = ssub.s32 1, %s6
  %s9 = scalar_select 0, %s8, %s6
  $region1: #{ant_gnn_forward.7} parent=0
    #allocation2 [shape = 'u8[32768]{0}', space=vmem, size = 0x8000, scoped, tag = 'input window, operand 0, single buffered']
    #allocation3 [shape = 's32[2]{0}', space=sflag, size = 0x8, scoped, tag = 'scoped memory for ant_gnn_forward.7']
    #allocation4 [shape = 's32[2]{0}', space=sflag, size = 0x8, scoped, tag = 'scoped memory for ant_gnn_forward.7']
    #allocation5 [shape = 'u8[512]{0}', space=vmem, size = 0x400, scoped, tag = 'input window, operand 1, single buffered']
    #allocation6 [shape = 's32[1]{0}', space=sflag, size = 0x4, scoped, tag = 'scoped memory for ant_gnn_forward.7']
    #allocation7 [shape = 'u8[32768]{0}', space=vmem, size = 0x8000, scoped, tag = 'input window, operand 2']
    #allocation8 [shape = 'u8[16384]{0}', space=vmem, size = 0x4000, scoped, tag = 'input window, operand 3']
    #allocation9 [shape = 'u8[512]{0}', space=vmem, size = 0x400, scoped, tag = 'input window, operand 4, single buffered']
    #allocation10 [shape = 'u8[32768]{0}', space=vmem, size = 0x8000, scoped, tag = 'output window, operand 0']
    %10 = vsyncpa [#allocation3], 0
    %11 = vsyncpa [#allocation6], 0
    %12 = vsyncpa [#allocation4], 0
    %s13 = scalar_lea.sflag [#allocation4], 1
    %14 = vsyncpa %s13, 0
    loop: start=0, step=1, limit=4
    $region2: #{ant_gnn_forward.7} parent=1 // loop_pre_header
      _
    $region3: #{ant_gnn_forward.7} parent=1 // loop_header
      %s16 = sphi 0, %s20
      %p17 = scmp.ge.s32.totalorder %s16, 4
      %s24 = sphi 0, %s24
      %s26 = sphi 0, %s24
      %s27 = sphi 0, %s26
      %s41 = sphi 0, %s27
      %s45 = sphi 0, %s45
      %s47 = sphi 0, %s45
      %s48 = sphi 0, %s47
      %s62 = sphi 0, %s48
      %s68 = sphi 0, %s70
      %s71 = sphi 0, %s68
      %s72 = sphi 0, %s71
      %s88 = sphi 0, %s72
      %s94 = sphi 0, %s96
      %s97 = sphi 0, %s94
      %s98 = sphi 0, %s97
      %s114 = sphi 0, %s98
      %s118 = sphi 0, %s118
      %s120 = sphi 0, %s118
      %s121 = sphi 0, %s120
      %s135 = sphi 0, %s121
      %s141 = sphi 0, %s143
      %s144 = sphi 0, %s141
      %s145 = sphi 0, %s144
      %s161 = sphi 0, %s145
    $region4: #{ant_gnn_forward.7} parent=1 // loop_header_branch
      %19 = sbr.rel (%p17) target = $region8
    $region5: #{ant_gnn_forward.7} parent=1 // loop_body
      %s21 = ssub.s32 %s16, 1
      %s22 = ssub.s32 %s16, 2
      %s23 = sadd.s32 %s16, 1
      %s25 = sadd.s32 %s24, 1
      %p28 = scmp.eq.s32.totalorder %s16, 1
      %p29 = scmp.ne.s32.totalorder %s24, %s26
      %p30 = scmp.eq.s32.totalorder %s16, 0
      %p31 = por %p29, %p30
      %p32 = scmp.ne.s32.totalorder %s24, %s26
      %p33 = scmp.eq.s32.totalorder %s21, 1
      %p34 = por %p32, %p33
      %p35 = scmp.ne.s32.totalorder %s26, %s27
      %p36 = scmp.eq.s32.totalorder %s21, 0
      %p37 = por %p35, %p36
      %p38 = scmp.ne.s32.totalorder %s26, %s27
      %p39 = scmp.eq.s32.totalorder %s22, 1
      %p40 = por %p38, %p39
      %p42 = scmp.ne.s32.totalorder %s27, %s41
      %p43 = scmp.eq.s32.totalorder %s22, 0
      %p44 = por %p42, %p43
      %s46 = sadd.s32 %s45, 1
      %p49 = scmp.eq.s32.totalorder %s16, 1
      %p50 = scmp.ne.s32.totalorder %s45, %s47
      %p51 = scmp.eq.s32.totalorder %s16, 0
      %p52 = por %p50, %p51
      %p53 = scmp.ne.s32.totalorder %s45, %s47
      %p54 = scmp.eq.s32.totalorder %s21, 1
      %p55 = por %p53, %p54
      %p56 = scmp.ne.s32.totalorder %s47, %s48
      %p57 = scmp.eq.s32.totalorder %s21, 0
      %p58 = por %p56, %p57
      %p59 = scmp.ne.s32.totalorder %s47, %s48
      %p60 = scmp.eq.s32.totalorder %s22, 1
      %p61 = por %p59, %p60
      %p63 = scmp.ne.s32.totalorder %s48, %s62
      %p64 = scmp.eq.s32.totalorder %s22, 0
      %p65 = por %p63, %p64
      %s66 = ssub.s32 %s16, %s23
      %p67 = scmp.eq.s32.totalorder %s66, 0
      %s69 = sadd.s32 %s68, 1
      %s70 = scalar_select %p67, %s68, %s69
      %p73 = pneg %p67
      %p74 = scmp.eq.s32.totalorder %s16, 1
      %p75 = por %p73, %p74
      %p76 = scmp.ne.s32.totalorder %s68, %s71
      %p77 = scmp.eq.s32.totalorder %s16, 0
      %p78 = por %p76, %p77
      %p79 = scmp.ne.s32.totalorder %s68, %s71
      %p80 = scmp.eq.s32.totalorder %s21, 1
      %p81 = por %p79, %p80
      %p82 = scmp.ne.s32.totalorder %s71, %s72
      %p83 = scmp.eq.s32.totalorder %s21, 0
      %p84 = por %p82, %p83
      %p85 = scmp.ne.s32.totalorder %s71, %s72
      %p86 = scmp.eq.s32.totalorder %s22, 1
      %p87 = por %p85, %p86
      %p89 = scmp.ne.s32.totalorder %s72, %s88
      %p90 = scmp.eq.s32.totalorder %s22, 0
      %p91 = por %p89, %p90
      %s92 = ssub.s32 %s16, %s23
      %p93 = scmp.eq.s32.totalorder %s92, 0
      %s95 = sadd.s32 %s94, 1
      %s96 = scalar_select %p93, %s94, %s95
      %p99 = pneg %p93
      %p100 = scmp.eq.s32.totalorder %s16, 1
      %p101 = por %p99, %p100
      %p102 = scmp.ne.s32.totalorder %s94, %s97
      %p103 = scmp.eq.s32.totalorder %s16, 0
      %p104 = por %p102, %p103
      %p105 = scmp.ne.s32.totalorder %s94, %s97
      %p106 = scmp.eq.s32.totalorder %s21, 1
      %p107 = por %p105, %p106
      %p108 = scmp.ne.s32.totalorder %s97, %s98
      %p109 = scmp.eq.s32.totalorder %s21, 0
      %p110 = por %p108, %p109
      %p111 = scmp.ne.s32.totalorder %s97, %s98
      %p112 = scmp.eq.s32.totalorder %s22, 1
      %p113 = por %p111, %p112
      %p115 = scmp.ne.s32.totalorder %s98, %s114
      %p116 = scmp.eq.s32.totalorder %s22, 0
      %p117 = por %p115, %p116
      %s119 = sadd.s32 %s118, 1
      %p122 = scmp.eq.s32.totalorder %s16, 1
      %p123 = scmp.ne.s32.totalorder %s118, %s120
      %p124 = scmp.eq.s32.totalorder %s16, 0
      %p125 = por %p123, %p124
      %p126 = scmp.ne.s32.totalorder %s118, %s120
      %p127 = scmp.eq.s32.totalorder %s21, 1
      %p128 = por %p126, %p127
      %p129 = scmp.ne.s32.totalorder %s120, %s121
      %p130 = scmp.eq.s32.totalorder %s21, 0
      %p131 = por %p129, %p130
      %p132 = scmp.ne.s32.totalorder %s120, %s121
      %p133 = scmp.eq.s32.totalorder %s22, 1
      %p134 = por %p132, %p133
      %p136 = scmp.ne.s32.totalorder %s121, %s135
      %p137 = scmp.eq.s32.totalorder %s22, 0
      %p138 = por %p136, %p137
      %s139 = ssub.s32 %s16, %s23
      %p140 = scmp.eq.s32.totalorder %s139, 0
      %s142 = sadd.s32 %s141, 1
      %s143 = scalar_select %p140, %s141, %s142
      %p146 = pneg %p140
      %p147 = scmp.eq.s32.totalorder %s16, 1
      %p148 = por %p146, %p147
      %p149 = scmp.ne.s32.totalorder %s141, %s144
      %p150 = scmp.eq.s32.totalorder %s16, 0
      %p151 = por %p149, %p150
      %p152 = scmp.ne.s32.totalorder %s141, %s144
      %p153 = scmp.eq.s32.totalorder %s21, 1
      %p154 = por %p152, %p153
      %p155 = scmp.ne.s32.totalorder %s144, %s145
      %p156 = scmp.eq.s32.totalorder %s21, 0
      %p157 = por %p155, %p156
      %p158 = scmp.ne.s32.totalorder %s144, %s145
      %p159 = scmp.eq.s32.totalorder %s22, 1
      %p160 = por %p158, %p159
      %p162 = scmp.ne.s32.totalorder %s145, %s161
      %p163 = scmp.eq.s32.totalorder %s22, 0
      %p164 = por %p162, %p163
      %p165 = scmp.le.s32.totalorder 1, %s16
      %p166 = scmp.lt.s32.totalorder %s16, 3
      %p167 = pnand %p165, %p166
      %p168 = pneg %p167
      // Predicated region
      $region9: #{ant_gnn_forward.7} parent=5 // pred_check
        _
      $region10: #{ant_gnn_forward.7} parent=5 // pred_check_branch
        %170 = sbr.rel (%p167) target = $region12
      $region11: #{ant_gnn_forward.7} parent=5 // pred_region
        %s171 = ssub.s32 %s16, 1
        // Predicated region
        $region13: #{ant_gnn_forward.7} parent=11 // pred_check
          %p172 = pneg %p37
        $region14: #{ant_gnn_forward.7} parent=11 // pred_check_branch
          %174 = sbr.rel (%p172) target = $region16
        $region15: #{ant_gnn_forward.7} parent=11 // pred_region
          %s176 = ssub.s32 1024, 1024
          %177 = vsyncadd [#allocation3], %s176
          %s178 = sshll.u32 [#allocation2], 4
          %s179 = int_to_ptr.vmem [resolvable:$true] %s178
          %184 = dma.hbm_to_vmem [thread:$0]  %s0, 1024, %s179, [#allocation3], 128, 128, 8
        $region16: #{ant_gnn_forward.7} parent=11 // pred_fallthru
          _
        // Predicated region
        $region17: #{ant_gnn_forward.7} parent=11 // pred_check
          %p185 = pneg %p58
        $region18: #{ant_gnn_forward.7} parent=11 // pred_check_branch
          %187 = sbr.rel (%p185) target = $region20
        $region19: #{ant_gnn_forward.7} parent=11 // pred_region
          %s189 = ssub.s32 16, 16
          %190 = vsyncadd [#allocation6], %s189
          %s192 = sshll.u32 [#allocation5], 4
          %s193 = int_to_ptr.vmem [resolvable:$true] %s192
          %195 = dma.hbm_to_vmem [thread:$0]  %s1, 16, %s193, [#allocation6]
        $region20: #{ant_gnn_forward.7} parent=11 // pred_fallthru
          _
        // Predicated region
        $region21: #{ant_gnn_forward.7} parent=11 // pred_check
          %p196 = pneg %p131
        $region22: #{ant_gnn_forward.7} parent=11 // pred_check_branch
          %198 = sbr.rel (%p196) target = $region24
        $region23: #{ant_gnn_forward.7} parent=11 // pred_region
          %s200 = ssub.s32 16, 16
          %201 = vsyncadd [#allocation6], %s200
          %s203 = sshll.u32 [#allocation9], 4
          %s204 = int_to_ptr.vmem [resolvable:$true] %s203
          %206 = dma.hbm_to_vmem [thread:$0]  %s4, 16, %s204, [#allocation6]
        $region24: #{ant_gnn_forward.7} parent=11 // pred_fallthru
          _
      $region12: #{ant_gnn_forward.7} parent=5 // pred_fallthru
        _
      %p207 = scmp.lt.s32.totalorder %s16, 2
      // Predicated region
      $region25: #{ant_gnn_forward.7} parent=5 // pred_check
        %p208 = pneg %p207
      $region26: #{ant_gnn_forward.7} parent=5 // pred_check_branch
        %210 = sbr.rel (%p208) target = $region28
      $region27: #{ant_gnn_forward.7} parent=5 // pred_region
        // Predicated region
        $region29: #{ant_gnn_forward.7} parent=27 // pred_check
          %p211 = pneg %p78
        $region30: #{ant_gnn_forward.7} parent=27 // pred_check_branch
          %213 = sbr.rel (%p211) target = $region32
        $region31: #{ant_gnn_forward.7} parent=27 // pred_region
          %s214 = sand.u32 %s16, 1
          %s215 = scalar_lea.sflag [#allocation3], %s214
          %s216 = sand.u32 %s68, 1
          %s217 = smul.addr %s216, 32
          %s218 = scalar_lea.vmem [#allocation7], %s217
          %s219 = smul.u32 4, %s16
          %s221 = ssub.s32 512, 512
          %222 = vsyncadd %s215, %s221
          %s223 = smul.addr %s219, 128
          %s224 = scalar_lea.hbm %s2, %s223
          %s225 = sshll.u32 %s218, 4
          %s226 = int_to_ptr.vmem [resolvable:$true] %s225
          %231 = dma.hbm_to_vmem [thread:$0]  %s224, 512, %s226, %s215, 128, 128, 8
        $region32: #{ant_gnn_forward.7} parent=27 // pred_fallthru
          _
        // Predicated region
        $region33: #{ant_gnn_forward.7} parent=27 // pred_check
          %p232 = pneg %p104
        $region34: #{ant_gnn_forward.7} parent=27 // pred_check_branch
          %234 = sbr.rel (%p232) target = $region36
        $region35: #{ant_gnn_forward.7} parent=27 // pred_region
          %s235 = sand.u32 %s16, 1
          %s236 = scalar_lea.sflag [#allocation3], %s235
          %s237 = sand.u32 %s94, 1
          %s238 = smul.addr %s237, 16
          %s239 = scalar_lea.vmem [#allocation8], %s238
          %s240 = smul.u32 4, %s16
          %s242 = ssub.s32 256, 256
          %243 = vsyncadd %s236, %s242
          %s244 = smul.addr %s240, 64
          %s245 = scalar_lea.hbm %s3, %s244
          %s246 = sshll.u32 %s239, 4
          %s247 = int_to_ptr.vmem [resolvable:$true] %s246
          %252 = dma.hbm_to_vmem [thread:$0]  %s245, 256, %s247, %s236, 64, 64, 4
        $region36: #{ant_gnn_forward.7} parent=27 // pred_fallthru
          _
      $region28: #{ant_gnn_forward.7} parent=5 // pred_fallthru
        _
      %p253 = scmp.le.s32.totalorder 1, %s16
      %p254 = scmp.lt.s32.totalorder %s16, 3
      %p255 = pnand %p253, %p254
      %p256 = pneg %p255
      // Predicated region
      $region37: #{ant_gnn_forward.7} parent=5 // pred_check
        _
      $region38: #{ant_gnn_forward.7} parent=5 // pred_check_branch
        %258 = sbr.rel (%p255) target = $region40
      $region39: #{ant_gnn_forward.7} parent=5 // pred_region
        %s259 = ssub.s32 %s16, 1
        // Predicated region
        $region41: #{ant_gnn_forward.7} parent=39 // pred_check
          %p260 = pneg %p37
        $region42: #{ant_gnn_forward.7} parent=39 // pred_check_branch
          %262 = sbr.rel (%p260) target = $region44
        $region43: #{ant_gnn_forward.7} parent=39 // pred_region
          %263 = dma.done [#allocation3], 1024
        $region44: #{ant_gnn_forward.7} parent=39 // pred_fallthru
          _
        // Predicated region
        $region45: #{ant_gnn_forward.7} parent=39 // pred_check
          %p264 = pneg %p58
        $region46: #{ant_gnn_forward.7} parent=39 // pred_check_branch
          %266 = sbr.rel (%p264) target = $region48
        $region47: #{ant_gnn_forward.7} parent=39 // pred_region
          %267 = dma.done [#allocation6], 16
        $region48: #{ant_gnn_forward.7} parent=39 // pred_fallthru
          _
        %s268 = sand.u32 %s21, 1
        %s269 = scalar_lea.sflag [#allocation3], %s268
        %s270 = sand.u32 %s71, 1
        %s271 = smul.addr %s270, 32
        %s272 = scalar_lea.vmem [#allocation7], %s271
        // Predicated region
        $region49: #{ant_gnn_forward.7} parent=39 // pred_check
          %p273 = pneg %p84
        $region50: #{ant_gnn_forward.7} parent=39 // pred_check_branch
          %275 = sbr.rel (%p273) target = $region52
        $region51: #{ant_gnn_forward.7} parent=39 // pred_region
          %276 = dma.done %s269, 512
        $region52: #{ant_gnn_forward.7} parent=39 // pred_fallthru
          _
        %s277 = sand.u32 %s21, 1
        %s278 = scalar_lea.sflag [#allocation3], %s277
        %s279 = sand.u32 %s97, 1
        %s280 = smul.addr %s279, 16
        %s281 = scalar_lea.vmem [#allocation8], %s280
        // Predicated region
        $region53: #{ant_gnn_forward.7} parent=39 // pred_check
          %p282 = pneg %p110
        $region54: #{ant_gnn_forward.7} parent=39 // pred_check_branch
          %284 = sbr.rel (%p282) target = $region56
        $region55: #{ant_gnn_forward.7} parent=39 // pred_region
          %285 = dma.done %s278, 256
        $region56: #{ant_gnn_forward.7} parent=39 // pred_fallthru
          _
        // Predicated region
        $region57: #{ant_gnn_forward.7} parent=39 // pred_check
          %p286 = pneg %p131
        $region58: #{ant_gnn_forward.7} parent=39 // pred_check_branch
          %288 = sbr.rel (%p286) target = $region60
        $region59: #{ant_gnn_forward.7} parent=39 // pred_region
          %289 = dma.done [#allocation6], 16
        $region60: #{ant_gnn_forward.7} parent=39 // pred_fallthru
          _
        %p290 = pneg %p37
        %p291 = pneg %p34
        %p292 = pneg %p58
        %p293 = pneg %p55
        %s294 = sand.u32 %s21, 1
        %s295 = scalar_lea.sflag [#allocation3], %s294
        %s296 = sand.u32 %s71, 1
        %s297 = smul.addr %s296, 32
        %s298 = scalar_lea.vmem [#allocation7], %s297
        %p299 = pneg %p84
        %p300 = pneg %p81
        %s301 = sand.u32 %s21, 1
        %s302 = scalar_lea.sflag [#allocation3], %s301
        %s303 = sand.u32 %s97, 1
        %s304 = smul.addr %s303, 16
        %s305 = scalar_lea.vmem [#allocation8], %s304
        %p306 = pneg %p110
        %p307 = pneg %p107
        %p308 = pneg %p131
        %p309 = pneg %p128
        %p310 = pneg %p157
        %p311 = pneg %p154
        %s312 = sand.u32 %s144, 1
        %s313 = scalar_lea.sflag [#allocation4], %s312
        %s314 = sand.u32 %s144, 1
        %s315 = smul.addr %s314, 32
        %s316 = scalar_lea.vmem [#allocation10], %s315
        %s317 = smul.u32 4, %s21
        %s318 = smul.u32 4, %s21
        %s319 = smul.u32 4, %s21
        %v321 = vld [vmem:[%s272] sm:$0xff]
        %v322 = vld [vmem:[%s272 + $0x8] sm:$0xff]
        %v323 = vld [vmem:[%s272 + $0x10] sm:$0xff]
        %v324 = vld [vmem:[%s272 + $0x18] sm:$0xff]
        %v325 = vld [vmem:[#allocation5] sm:$0x1]
        %327 = vset.pattern.permute.xlu0 0
        %328 = vperm.xlu0 %327, %v321
        %v329 = vpop.permute.xlu0 %328
        %332 = vset.pattern.permute.xlu0 0
        %333 = vperm.xlu0 %332, %v322
        %v334 = vpop.permute.xlu0 %333
        %337 = vset.pattern.permute.xlu0 0
        %338 = vperm.xlu0 %337, %v323
        %v339 = vpop.permute.xlu0 %338
        %342 = vset.pattern.permute.xlu0 0
        %343 = vperm.xlu0 %342, %v324
        %v344 = vpop.permute.xlu0 %343
        %v347 = vlaneseq
        %v348 = vshrl.u32 %v347, 7
        %v349 = vsub.s32 0, %v348
        %v350 = vrot.slane %v325, %v349
        %v352 = vadd.f32 %v329, %v350
        %v353 = vadd.f32 %v334, %v350
        %v354 = vadd.f32 %v339, %v350
        %v355 = vadd.f32 %v344, %v350
        %v356 = vmul.f32 %v352, 0.2
        %v357 = vmul.f32 %v353, 0.2
        %v358 = vmul.f32 %v354, 0.2
        %v359 = vmul.f32 %v355, 0.2
        %v360 = vmax.f32 %v352, %v356
        %v361 = vmax.f32 %v353, %v357
        %v362 = vmax.f32 %v354, %v358
        %v363 = vmax.f32 %v355, %v359
        %v364 = vld [vmem:[%s281] sm:$0xf]
        %v365 = vld [vmem:[%s281 + $0x4] sm:$0xf]
        %v366 = vld [vmem:[%s281 + $0x8] sm:$0xf]
        %v367 = vld [vmem:[%s281 + $0xc] sm:$0xf]
        %v368 = vunpack.c.l.bf16 %v364
        %v369 = vunpack.c.l.bf16 %v365
        %v370 = vunpack.c.l.bf16 %v366
        %v371 = vunpack.c.l.bf16 %v367
        %v372 = vadd.f32 %v360, %v368
        %v373 = vadd.f32 %v361, %v369
        %v374 = vadd.f32 %v362, %v370
        %v375 = vadd.f32 %v363, %v371
        %vm376 = vcmask 523264
        %v377 = vsel %vm376, %v372, -inf
        %378 = vmax.xlane.f32.xlu0 %v377
        %v379 = vpop.xlane.xlu0 %378
        %v380 = vsel %vm376, %v373, -inf
        %381 = vmax.xlane.f32.xlu0 %v380
        %v382 = vpop.xlane.xlu0 %381
        %v383 = vsel %vm376, %v374, -inf
        %384 = vmax.xlane.f32.xlu0 %v383
        %v385 = vpop.xlane.xlu0 %384
        %v386 = vsel %vm376, %v375, -inf
        %387 = vmax.xlane.f32.xlu0 %v386
        %v388 = vpop.xlane.xlu0 %387
        %v389 = vmax.f32 %v379, 0.0
        %v390 = vmax.f32 %v382, 0.0
        %v391 = vmax.f32 %v385, 0.0
        %v392 = vmax.f32 %v388, 0.0
        %v393 = vsub.f32 %v372, %v389
        %v394 = vsub.f32 %v373, %v390
        %v395 = vsub.f32 %v374, %v391
        %v396 = vsub.f32 %v375, %v392
        %v397 = vmul.f32 %v393, 1.442695
        %v398 = vpow.pop %v397
        %v399 = vmul.f32 %v394, 1.442695
        %v400 = vpow.pop %v399
        %v401 = vmul.f32 %v395, 1.442695
        %v402 = vpow.pop %v401
        %v403 = vmul.f32 %v396, 1.442695
        %v404 = vpow.pop %v403
        %v405 = vpack.c.bf16 %v400, %v398
        %v406 = vpack.c.bf16 %v404, %v402
        %v407 = vld [vmem:[#allocation2] sm:$0xff]
        %v408 = vld [vmem:[#allocation2 + $0x8] sm:$0xff]
        %v409 = vld [vmem:[#allocation2 + $0x10] sm:$0xff]
        %v410 = vld [vmem:[#allocation2 + $0x18] sm:$0xff]
        %v411 = vld [vmem:[#allocation2 + $0x20] sm:$0xff]
        %v412 = vld [vmem:[#allocation2 + $0x28] sm:$0xff]
        %v413 = vld [vmem:[#allocation2 + $0x30] sm:$0xff]
        %v414 = vld [vmem:[#allocation2 + $0x38] sm:$0xff]
        %v423 = vunpack.c.l.b16 %v407
        %v424 = vunpack.c.h.b16 %v407
        %v425 = vunpack.c.l.b16 %v408
        %v426 = vunpack.c.h.b16 %v408
        %v427 = vunpack.c.l.b16 %v409
        %v428 = vunpack.c.h.b16 %v409
        %v429 = vunpack.c.l.b16 %v410
        %v430 = vunpack.c.h.b16 %v410
        %v431 = vunpack.c.l.b16 %v411
        %v432 = vunpack.c.h.b16 %v411
        %v433 = vunpack.c.l.b16 %v412
        %v434 = vunpack.c.h.b16 %v412
        %v435 = vunpack.c.l.b16 %v413
        %v436 = vunpack.c.h.b16 %v413
        %v437 = vunpack.c.l.b16 %v414
        %v438 = vunpack.c.h.b16 %v414
        %v439 = vpack.c.b16 %v425, %v423
        %v440 = vpack.c.b16 %v426, %v424
        %v441 = vpack.c.b16 %v429, %v427
        %v442 = vpack.c.b16 %v430, %v428
        %v443 = vpack.c.b16 %v433, %v431
        %v444 = vpack.c.b16 %v434, %v432
        %v445 = vpack.c.b16 %v437, %v435
        %v446 = vpack.c.b16 %v438, %v436
        %v456 = vsel %vm376, %v405, 0
        %v459 = vsel %vm376, %v406, 0
        %461 = vmatprep.subr.bf16.mxu0 %v440
        %462 = vmatpush1.bf16.msra.mxu0 %v439
        %463 = vmatprep.subr.bf16.mxu0 %v442
        %464 = vmatpush1.bf16.msra.mxu0 %v441
        %465 = vmatprep.subr.bf16.mxu0 %v444
        %466 = vmatpush1.bf16.msra.mxu0 %v443
        %467 = vmatprep.subr.bf16.mxu0 %v446
        %468 = vmatpush1.bf16.msra.mxu0 %v445
        %469 = vmatprep.subr.bf16.mxu0 0
        %470 = vmatpush1.bf16.msra.mxu0 0
        %471 = vmatprep.subr.bf16.mxu0 0
        %472 = vmatpush1.bf16.msra.mxu0 0
        %473 = vmatprep.subr.bf16.mxu0 0
        %474 = vmatpush1.bf16.msra.mxu0 0
        %475 = vmatprep.subr.bf16.mxu0 0
        %476 = vmatpush1.bf16.msra.mxu0 0
        %477 = vmatprep.subr.bf16.mxu0 0
        %478 = vmatpush1.bf16.msra.mxu0 0
        %479 = vmatprep.subr.bf16.mxu0 0
        %480 = vmatpush1.bf16.msra.mxu0 0
        %481 = vmatprep.subr.bf16.mxu0 0
        %482 = vmatpush1.bf16.msra.mxu0 0
        %483 = vmatprep.subr.bf16.mxu0 0
        %484 = vmatpush1.bf16.msra.mxu0 0
        %485 = vmatprep.subr.bf16.mxu0 0
        %486 = vmatpush1.bf16.msra.mxu0 0
        %487 = vmatprep.subr.bf16.mxu0 0
        %488 = vmatpush1.bf16.msra.mxu0 0
        %489 = vmatprep.subr.bf16.mxu0 0
        %490 = vmatpush1.bf16.msra.mxu0 0
        %491 = vmatprep.subr.bf16.mxu0 0
        %492 = vmatpush1.bf16.msra.mxu0 0
        %493 = vmatprep.mubr.bf16.mxu0 0
        %494 = vmatmul.mubr.bf16.gmra.mrb[0].mxu0 %v456
        %v495 = vpop.f32.mrb[0].mxu0
        %v496 = vadd.f32 0.0, %v495
        %v497 = vpop.f32.mrb[0].mxu0
        %v498 = vadd.f32 0.0, %v497
        %v499 = vpop.f32.mrb[0].mxu0
        %v500 = vadd.f32 0.0, %v499
        %v501 = vpop.f32.mrb[0].mxu0
        %v502 = vadd.f32 0.0, %v501
        %503 = vmatprep.mubr.bf16.mxu0 0
        %504 = vmatmul.mubr.bf16.gmra.mrb[0].mxu0 %v459
        %v505 = vpop.f32.mrb[0].mxu0
        %v506 = vadd.f32 0.0, %v505
        %v507 = vpop.f32.mrb[0].mxu0
        %v508 = vadd.f32 0.0, %v507
        %v509 = vpop.f32.mrb[0].mxu0
        %v510 = vadd.f32 0.0, %v509
        %v511 = vpop.f32.mrb[0].mxu0
        %v512 = vadd.f32 0.0, %v511
        %513 = vdwg.mxu0
        %v514 = vmax.f32 %v498, 1e-30
        %v515 = vmax.f32 %v502, 1e-30
        %v516 = vmax.f32 %v508, 1e-30
        %v517 = vmax.f32 %v512, 1e-30
        %v518 = vrcp.pop %v514
        %v519 = vrcp.pop %v515
        %v520 = vrcp.pop %v516
        %v521 = vrcp.pop %v517
        %523 = vset.pattern.permute.xlu0 0
        %524 = vperm.xlu0 %523, %v518
        %v525 = vpop.permute.xlu0 %524
        %528 = vset.pattern.permute.xlu0 0
        %529 = vperm.xlu0 %528, %v519
        %v530 = vpop.permute.xlu0 %529
        %533 = vset.pattern.permute.xlu0 0
        %534 = vperm.xlu0 %533, %v520
        %v535 = vpop.permute.xlu0 %534
        %538 = vset.pattern.permute.xlu0 0
        %539 = vperm.xlu0 %538, %v521
        %v540 = vpop.permute.xlu0 %539
        %v542 = vmul.f32 %v496, %v525
        %v543 = vmul.f32 %v500, %v530
        %v544 = vmul.f32 %v506, %v535
        %v545 = vmul.f32 %v510, %v540
        %v546 = vld [vmem:[#allocation9] sm:$0x1]
        %v548 = vlaneseq
        %v549 = vshrl.u32 %v548, 7
        %v550 = vsub.s32 0, %v549
        %v551 = vrot.slane %v546, %v550
        %v553 = vadd.f32 %v542, %v551
        %v554 = vadd.f32 %v543, %v551
        %v555 = vadd.f32 %v544, %v551
        %v556 = vadd.f32 %v545, %v551
        %557 = vst [vmem:[%s316] sm:$0xff] %v553
        %558 = vst [vmem:[%s316 + $0x8] sm:$0xff] %v554
        %559 = vst [vmem:[%s316 + $0x10] sm:$0xff] %v555
        %560 = vst [vmem:[%s316 + $0x18] sm:$0xff] %v556
        %s561 = sand.u32 %s144, 1
        %s562 = scalar_lea.sflag [#allocation4], %s561
        %s563 = sand.u32 %s144, 1
        %s564 = smul.addr %s563, 32
        %s565 = scalar_lea.vmem [#allocation10], %s564
        // Predicated region
        $region61: #{ant_gnn_forward.7} parent=39 // pred_check
          %p566 = pneg %p154
        $region62: #{ant_gnn_forward.7} parent=39 // pred_check_branch
          %568 = sbr.rel (%p566) target = $region64
        $region63: #{ant_gnn_forward.7} parent=39 // pred_region
          %s569 = smul.u32 4, %s21
          %s571 = ssub.s32 512, 512
          %572 = vsyncadd %s562, %s571
          %s573 = smul.addr %s569, 128
          %s574 = scalar_lea.hbm %s5, %s573
          %s575 = sshll.u32 %s565, 4
          %s576 = int_to_ptr.vmem [resolvable:$true] %s575
          %581 = dma.vmem_to_hbm [thread:$0]  %s576, 512, %s574, %s562, 128, 128, 8
        $region64: #{ant_gnn_forward.7} parent=39 // pred_fallthru
          _
      $region40: #{ant_gnn_forward.7} parent=5 // pred_fallthru
        _
      %p582 = scmp.le.s32.totalorder 2, %s16
      // Predicated region
      $region65: #{ant_gnn_forward.7} parent=5 // pred_check
        %p583 = pneg %p582
      $region66: #{ant_gnn_forward.7} parent=5 // pred_check_branch
        %585 = sbr.rel (%p583) target = $region68
      $region67: #{ant_gnn_forward.7} parent=5 // pred_region
        %s586 = ssub.s32 %s16, 2
        // Predicated region
        $region69: #{ant_gnn_forward.7} parent=67 // pred_check
          %p587 = pneg %p160
        $region70: #{ant_gnn_forward.7} parent=67 // pred_check_branch
          %589 = sbr.rel (%p587) target = $region72
        $region71: #{ant_gnn_forward.7} parent=67 // pred_region
          %s590 = sand.u32 %s145, 1
          %s591 = scalar_lea.sflag [#allocation4], %s590
          %s592 = sand.u32 %s145, 1
          %s593 = smul.addr %s592, 32
          %s594 = scalar_lea.vmem [#allocation10], %s593
          %595 = dma.done %s591, 512
        $region72: #{ant_gnn_forward.7} parent=67 // pred_fallthru
          _
      $region68: #{ant_gnn_forward.7} parent=5 // pred_fallthru
        _
    $region6: #{ant_gnn_forward.7} parent=1 // loop_footer
      %s20 = sadd.s32 1, %s16
    $region7: #{ant_gnn_forward.7} parent=1 // loop_footer_branch
      %15 = sbr.rel target = $region3
    $region8: #{ant_gnn_forward.7} parent=1 // loop_exit
      _
    %596 = vsyncpa [#allocation3], 1
    %s597 = scalar_lea.sflag [#allocation3], 1
    %598 = vsyncpa %s597, 1
    %599 = vsyncpa [#allocation6], 1
    %600 = vsyncpa [#allocation4], 1
    %s601 = scalar_lea.sflag [#allocation4], 1
    %602 = vsyncpa %s601, 1

// kernel: ant_gnn_forward.5
$region0: #{ant_gnn_forward.5}
  #allocation0 [shape = 'u32[]', space=smem, size = 0x4, offset = 0x4, fixed_abs, tag = 'smem constant byte address 0x4 - core index']
  #allocation1 [shape = 'u32[144,128]{1,0:T(1,128)}', space=vmem, size = 0x12000, scoped, tag = 'internal scratch']
  %s0 = inlined_call_operand.hbm [shape: bf16[64,256], index: 0, kind: input, shape index: {}]
  %s1 = inlined_call_operand.hbm [shape: f32[1,64], index: 1, kind: input, shape index: {}]
  %s2 = inlined_call_operand.hbm [shape: f32[64,1], index: 2, kind: input, shape index: {}]
  %s3 = inlined_call_operand.hbm [shape: bf16[64,64], index: 3, kind: input, shape index: {}]
  %s4 = inlined_call_operand.hbm [shape: f32[1,128], index: 4, kind: input, shape index: {}]
  %s5 = inlined_call_operand.hbm [shape: bf16[64,128], index: 5, kind: output, shape index: {}]
  %s6 = sld [smem:[#allocation0]]
  $region73: #{ant_gnn_forward.5} parent=0
    _
  %s8 = ssub.s32 1, %s6
  %s9 = scalar_select 0, %s8, %s6
  $region1: #{ant_gnn_forward.5} parent=0
    #allocation2 [shape = 'u8[32768]{0}', space=vmem, size = 0x8000, scoped, tag = 'input window, operand 0, single buffered']
    #allocation3 [shape = 's32[2]{0}', space=sflag, size = 0x8, scoped, tag = 'scoped memory for ant_gnn_forward.5']
    #allocation4 [shape = 's32[2]{0}', space=sflag, size = 0x8, scoped, tag = 'scoped memory for ant_gnn_forward.5']
    #allocation5 [shape = 'u8[512]{0}', space=vmem, size = 0x400, scoped, tag = 'input window, operand 1, single buffered']
    #allocation6 [shape = 's32[1]{0}', space=sflag, size = 0x4, scoped, tag = 'scoped memory for ant_gnn_forward.5']
    #allocation7 [shape = 'u8[32768]{0}', space=vmem, size = 0x8000, scoped, tag = 'input window, operand 2']
    #allocation8 [shape = 'u8[16384]{0}', space=vmem, size = 0x4000, scoped, tag = 'input window, operand 3']
    #allocation9 [shape = 'u8[512]{0}', space=vmem, size = 0x400, scoped, tag = 'input window, operand 4, single buffered']
    #allocation10 [shape = 'u8[16384]{0}', space=vmem, size = 0x4000, scoped, tag = 'output window, operand 0']
    %10 = vsyncpa [#allocation3], 0
    %11 = vsyncpa [#allocation6], 0
    %12 = vsyncpa [#allocation4], 0
    %s13 = scalar_lea.sflag [#allocation4], 1
    %14 = vsyncpa %s13, 0
    loop: start=0, step=1, limit=4
    $region2: #{ant_gnn_forward.5} parent=1 // loop_pre_header
      _
    $region3: #{ant_gnn_forward.5} parent=1 // loop_header
      %s16 = sphi 0, %s20
      %p17 = scmp.ge.s32.totalorder %s16, 4
      %s24 = sphi 0, %s24
      %s26 = sphi 0, %s24
      %s27 = sphi 0, %s26
      %s41 = sphi 0, %s27
      %s45 = sphi 0, %s45
      %s47 = sphi 0, %s45
      %s48 = sphi 0, %s47
      %s62 = sphi 0, %s48
      %s68 = sphi 0, %s70
      %s71 = sphi 0, %s68
      %s72 = sphi 0, %s71
      %s88 = sphi 0, %s72
      %s94 = sphi 0, %s96
      %s97 = sphi 0, %s94
      %s98 = sphi 0, %s97
      %s114 = sphi 0, %s98
      %s118 = sphi 0, %s118
      %s120 = sphi 0, %s118
      %s121 = sphi 0, %s120
      %s135 = sphi 0, %s121
      %s141 = sphi 0, %s143
      %s144 = sphi 0, %s141
      %s145 = sphi 0, %s144
      %s161 = sphi 0, %s145
    $region4: #{ant_gnn_forward.5} parent=1 // loop_header_branch
      %19 = sbr.rel (%p17) target = $region8
    $region5: #{ant_gnn_forward.5} parent=1 // loop_body
      %s21 = ssub.s32 %s16, 1
      %s22 = ssub.s32 %s16, 2
      %s23 = sadd.s32 %s16, 1
      %s25 = sadd.s32 %s24, 1
      %p28 = scmp.eq.s32.totalorder %s16, 1
      %p29 = scmp.ne.s32.totalorder %s24, %s26
      %p30 = scmp.eq.s32.totalorder %s16, 0
      %p31 = por %p29, %p30
      %p32 = scmp.ne.s32.totalorder %s24, %s26
      %p33 = scmp.eq.s32.totalorder %s21, 1
      %p34 = por %p32, %p33
      %p35 = scmp.ne.s32.totalorder %s26, %s27
      %p36 = scmp.eq.s32.totalorder %s21, 0
      %p37 = por %p35, %p36
      %p38 = scmp.ne.s32.totalorder %s26, %s27
      %p39 = scmp.eq.s32.totalorder %s22, 1
      %p40 = por %p38, %p39
      %p42 = scmp.ne.s32.totalorder %s27, %s41
      %p43 = scmp.eq.s32.totalorder %s22, 0
      %p44 = por %p42, %p43
      %s46 = sadd.s32 %s45, 1
      %p49 = scmp.eq.s32.totalorder %s16, 1
      %p50 = scmp.ne.s32.totalorder %s45, %s47
      %p51 = scmp.eq.s32.totalorder %s16, 0
      %p52 = por %p50, %p51
      %p53 = scmp.ne.s32.totalorder %s45, %s47
      %p54 = scmp.eq.s32.totalorder %s21, 1
      %p55 = por %p53, %p54
      %p56 = scmp.ne.s32.totalorder %s47, %s48
      %p57 = scmp.eq.s32.totalorder %s21, 0
      %p58 = por %p56, %p57
      %p59 = scmp.ne.s32.totalorder %s47, %s48
      %p60 = scmp.eq.s32.totalorder %s22, 1
      %p61 = por %p59, %p60
      %p63 = scmp.ne.s32.totalorder %s48, %s62
      %p64 = scmp.eq.s32.totalorder %s22, 0
      %p65 = por %p63, %p64
      %s66 = ssub.s32 %s16, %s23
      %p67 = scmp.eq.s32.totalorder %s66, 0
      %s69 = sadd.s32 %s68, 1
      %s70 = scalar_select %p67, %s68, %s69
      %p73 = pneg %p67
      %p74 = scmp.eq.s32.totalorder %s16, 1
      %p75 = por %p73, %p74
      %p76 = scmp.ne.s32.totalorder %s68, %s71
      %p77 = scmp.eq.s32.totalorder %s16, 0
      %p78 = por %p76, %p77
      %p79 = scmp.ne.s32.totalorder %s68, %s71
      %p80 = scmp.eq.s32.totalorder %s21, 1
      %p81 = por %p79, %p80
      %p82 = scmp.ne.s32.totalorder %s71, %s72
      %p83 = scmp.eq.s32.totalorder %s21, 0
      %p84 = por %p82, %p83
      %p85 = scmp.ne.s32.totalorder %s71, %s72
      %p86 = scmp.eq.s32.totalorder %s22, 1
      %p87 = por %p85, %p86
      %p89 = scmp.ne.s32.totalorder %s72, %s88
      %p90 = scmp.eq.s32.totalorder %s22, 0
      %p91 = por %p89, %p90
      %s92 = ssub.s32 %s16, %s23
      %p93 = scmp.eq.s32.totalorder %s92, 0
      %s95 = sadd.s32 %s94, 1
      %s96 = scalar_select %p93, %s94, %s95
      %p99 = pneg %p93
      %p100 = scmp.eq.s32.totalorder %s16, 1
      %p101 = por %p99, %p100
      %p102 = scmp.ne.s32.totalorder %s94, %s97
      %p103 = scmp.eq.s32.totalorder %s16, 0
      %p104 = por %p102, %p103
      %p105 = scmp.ne.s32.totalorder %s94, %s97
      %p106 = scmp.eq.s32.totalorder %s21, 1
      %p107 = por %p105, %p106
      %p108 = scmp.ne.s32.totalorder %s97, %s98
      %p109 = scmp.eq.s32.totalorder %s21, 0
      %p110 = por %p108, %p109
      %p111 = scmp.ne.s32.totalorder %s97, %s98
      %p112 = scmp.eq.s32.totalorder %s22, 1
      %p113 = por %p111, %p112
      %p115 = scmp.ne.s32.totalorder %s98, %s114
      %p116 = scmp.eq.s32.totalorder %s22, 0
      %p117 = por %p115, %p116
      %s119 = sadd.s32 %s118, 1
      %p122 = scmp.eq.s32.totalorder %s16, 1
      %p123 = scmp.ne.s32.totalorder %s118, %s120
      %p124 = scmp.eq.s32.totalorder %s16, 0
      %p125 = por %p123, %p124
      %p126 = scmp.ne.s32.totalorder %s118, %s120
      %p127 = scmp.eq.s32.totalorder %s21, 1
      %p128 = por %p126, %p127
      %p129 = scmp.ne.s32.totalorder %s120, %s121
      %p130 = scmp.eq.s32.totalorder %s21, 0
      %p131 = por %p129, %p130
      %p132 = scmp.ne.s32.totalorder %s120, %s121
      %p133 = scmp.eq.s32.totalorder %s22, 1
      %p134 = por %p132, %p133
      %p136 = scmp.ne.s32.totalorder %s121, %s135
      %p137 = scmp.eq.s32.totalorder %s22, 0
      %p138 = por %p136, %p137
      %s139 = ssub.s32 %s16, %s23
      %p140 = scmp.eq.s32.totalorder %s139, 0
      %s142 = sadd.s32 %s141, 1
      %s143 = scalar_select %p140, %s141, %s142
      %p146 = pneg %p140
      %p147 = scmp.eq.s32.totalorder %s16, 1
      %p148 = por %p146, %p147
      %p149 = scmp.ne.s32.totalorder %s141, %s144
      %p150 = scmp.eq.s32.totalorder %s16, 0
      %p151 = por %p149, %p150
      %p152 = scmp.ne.s32.totalorder %s141, %s144
      %p153 = scmp.eq.s32.totalorder %s21, 1
      %p154 = por %p152, %p153
      %p155 = scmp.ne.s32.totalorder %s144, %s145
      %p156 = scmp.eq.s32.totalorder %s21, 0
      %p157 = por %p155, %p156
      %p158 = scmp.ne.s32.totalorder %s144, %s145
      %p159 = scmp.eq.s32.totalorder %s22, 1
      %p160 = por %p158, %p159
      %p162 = scmp.ne.s32.totalorder %s145, %s161
      %p163 = scmp.eq.s32.totalorder %s22, 0
      %p164 = por %p162, %p163
      %p165 = scmp.le.s32.totalorder 1, %s16
      %p166 = scmp.lt.s32.totalorder %s16, 3
      %p167 = pnand %p165, %p166
      %p168 = pneg %p167
      // Predicated region
      $region9: #{ant_gnn_forward.5} parent=5 // pred_check
        _
      $region10: #{ant_gnn_forward.5} parent=5 // pred_check_branch
        %170 = sbr.rel (%p167) target = $region12
      $region11: #{ant_gnn_forward.5} parent=5 // pred_region
        %s171 = ssub.s32 %s16, 1
        // Predicated region
        $region13: #{ant_gnn_forward.5} parent=11 // pred_check
          %p172 = pneg %p37
        $region14: #{ant_gnn_forward.5} parent=11 // pred_check_branch
          %174 = sbr.rel (%p172) target = $region16
        $region15: #{ant_gnn_forward.5} parent=11 // pred_region
          %s176 = ssub.s32 1024, 1024
          %177 = vsyncadd [#allocation3], %s176
          %s178 = sshll.u32 [#allocation2], 4
          %s179 = int_to_ptr.vmem [resolvable:$true] %s178
          %184 = dma.hbm_to_vmem [thread:$0]  %s0, 1024, %s179, [#allocation3], 128, 128, 8
        $region16: #{ant_gnn_forward.5} parent=11 // pred_fallthru
          _
        // Predicated region
        $region17: #{ant_gnn_forward.5} parent=11 // pred_check
          %p185 = pneg %p58
        $region18: #{ant_gnn_forward.5} parent=11 // pred_check_branch
          %187 = sbr.rel (%p185) target = $region20
        $region19: #{ant_gnn_forward.5} parent=11 // pred_region
          %s189 = ssub.s32 16, 16
          %190 = vsyncadd [#allocation6], %s189
          %s192 = sshll.u32 [#allocation5], 4
          %s193 = int_to_ptr.vmem [resolvable:$true] %s192
          %195 = dma.hbm_to_vmem [thread:$0]  %s1, 16, %s193, [#allocation6]
        $region20: #{ant_gnn_forward.5} parent=11 // pred_fallthru
          _
        // Predicated region
        $region21: #{ant_gnn_forward.5} parent=11 // pred_check
          %p196 = pneg %p131
        $region22: #{ant_gnn_forward.5} parent=11 // pred_check_branch
          %198 = sbr.rel (%p196) target = $region24
        $region23: #{ant_gnn_forward.5} parent=11 // pred_region
          %s200 = ssub.s32 16, 16
          %201 = vsyncadd [#allocation6], %s200
          %s203 = sshll.u32 [#allocation9], 4
          %s204 = int_to_ptr.vmem [resolvable:$true] %s203
          %206 = dma.hbm_to_vmem [thread:$0]  %s4, 16, %s204, [#allocation6]
        $region24: #{ant_gnn_forward.5} parent=11 // pred_fallthru
          _
      $region12: #{ant_gnn_forward.5} parent=5 // pred_fallthru
        _
      %p207 = scmp.lt.s32.totalorder %s16, 2
      // Predicated region
      $region25: #{ant_gnn_forward.5} parent=5 // pred_check
        %p208 = pneg %p207
      $region26: #{ant_gnn_forward.5} parent=5 // pred_check_branch
        %210 = sbr.rel (%p208) target = $region28
      $region27: #{ant_gnn_forward.5} parent=5 // pred_region
        // Predicated region
        $region29: #{ant_gnn_forward.5} parent=27 // pred_check
          %p211 = pneg %p78
        $region30: #{ant_gnn_forward.5} parent=27 // pred_check_branch
          %213 = sbr.rel (%p211) target = $region32
        $region31: #{ant_gnn_forward.5} parent=27 // pred_region
          %s214 = sand.u32 %s16, 1
          %s215 = scalar_lea.sflag [#allocation3], %s214
          %s216 = sand.u32 %s68, 1
          %s217 = smul.addr %s216, 32
          %s218 = scalar_lea.vmem [#allocation7], %s217
          %s219 = smul.u32 4, %s16
          %s221 = ssub.s32 512, 512
          %222 = vsyncadd %s215, %s221
          %s223 = smul.addr %s219, 128
          %s224 = scalar_lea.hbm %s2, %s223
          %s225 = sshll.u32 %s218, 4
          %s226 = int_to_ptr.vmem [resolvable:$true] %s225
          %231 = dma.hbm_to_vmem [thread:$0]  %s224, 512, %s226, %s215, 128, 128, 8
        $region32: #{ant_gnn_forward.5} parent=27 // pred_fallthru
          _
        // Predicated region
        $region33: #{ant_gnn_forward.5} parent=27 // pred_check
          %p232 = pneg %p104
        $region34: #{ant_gnn_forward.5} parent=27 // pred_check_branch
          %234 = sbr.rel (%p232) target = $region36
        $region35: #{ant_gnn_forward.5} parent=27 // pred_region
          %s235 = sand.u32 %s16, 1
          %s236 = scalar_lea.sflag [#allocation3], %s235
          %s237 = sand.u32 %s94, 1
          %s238 = smul.addr %s237, 16
          %s239 = scalar_lea.vmem [#allocation8], %s238
          %s240 = smul.u32 4, %s16
          %s242 = ssub.s32 256, 256
          %243 = vsyncadd %s236, %s242
          %s244 = smul.addr %s240, 64
          %s245 = scalar_lea.hbm %s3, %s244
          %s246 = sshll.u32 %s239, 4
          %s247 = int_to_ptr.vmem [resolvable:$true] %s246
          %252 = dma.hbm_to_vmem [thread:$0]  %s245, 256, %s247, %s236, 64, 64, 4
        $region36: #{ant_gnn_forward.5} parent=27 // pred_fallthru
          _
      $region28: #{ant_gnn_forward.5} parent=5 // pred_fallthru
        _
      %p253 = scmp.le.s32.totalorder 1, %s16
      %p254 = scmp.lt.s32.totalorder %s16, 3
      %p255 = pnand %p253, %p254
      %p256 = pneg %p255
      // Predicated region
      $region37: #{ant_gnn_forward.5} parent=5 // pred_check
        _
      $region38: #{ant_gnn_forward.5} parent=5 // pred_check_branch
        %258 = sbr.rel (%p255) target = $region40
      $region39: #{ant_gnn_forward.5} parent=5 // pred_region
        %s259 = ssub.s32 %s16, 1
        // Predicated region
        $region41: #{ant_gnn_forward.5} parent=39 // pred_check
          %p260 = pneg %p37
        $region42: #{ant_gnn_forward.5} parent=39 // pred_check_branch
          %262 = sbr.rel (%p260) target = $region44
        $region43: #{ant_gnn_forward.5} parent=39 // pred_region
          %263 = dma.done [#allocation3], 1024
        $region44: #{ant_gnn_forward.5} parent=39 // pred_fallthru
          _
        // Predicated region
        $region45: #{ant_gnn_forward.5} parent=39 // pred_check
          %p264 = pneg %p58
        $region46: #{ant_gnn_forward.5} parent=39 // pred_check_branch
          %266 = sbr.rel (%p264) target = $region48
        $region47: #{ant_gnn_forward.5} parent=39 // pred_region
          %267 = dma.done [#allocation6], 16
        $region48: #{ant_gnn_forward.5} parent=39 // pred_fallthru
          _
        %s268 = sand.u32 %s21, 1
        %s269 = scalar_lea.sflag [#allocation3], %s268
        %s270 = sand.u32 %s71, 1
        %s271 = smul.addr %s270, 32
        %s272 = scalar_lea.vmem [#allocation7], %s271
        // Predicated region
        $region49: #{ant_gnn_forward.5} parent=39 // pred_check
          %p273 = pneg %p84
        $region50: #{ant_gnn_forward.5} parent=39 // pred_check_branch
          %275 = sbr.rel (%p273) target = $region52
        $region51: #{ant_gnn_forward.5} parent=39 // pred_region
          %276 = dma.done %s269, 512
        $region52: #{ant_gnn_forward.5} parent=39 // pred_fallthru
          _
        %s277 = sand.u32 %s21, 1
        %s278 = scalar_lea.sflag [#allocation3], %s277
        %s279 = sand.u32 %s97, 1
        %s280 = smul.addr %s279, 16
        %s281 = scalar_lea.vmem [#allocation8], %s280
        // Predicated region
        $region53: #{ant_gnn_forward.5} parent=39 // pred_check
          %p282 = pneg %p110
        $region54: #{ant_gnn_forward.5} parent=39 // pred_check_branch
          %284 = sbr.rel (%p282) target = $region56
        $region55: #{ant_gnn_forward.5} parent=39 // pred_region
          %285 = dma.done %s278, 256
        $region56: #{ant_gnn_forward.5} parent=39 // pred_fallthru
          _
        // Predicated region
        $region57: #{ant_gnn_forward.5} parent=39 // pred_check
          %p286 = pneg %p131
        $region58: #{ant_gnn_forward.5} parent=39 // pred_check_branch
          %288 = sbr.rel (%p286) target = $region60
        $region59: #{ant_gnn_forward.5} parent=39 // pred_region
          %289 = dma.done [#allocation6], 16
        $region60: #{ant_gnn_forward.5} parent=39 // pred_fallthru
          _
        %p290 = pneg %p37
        %p291 = pneg %p34
        %p292 = pneg %p58
        %p293 = pneg %p55
        %s294 = sand.u32 %s21, 1
        %s295 = scalar_lea.sflag [#allocation3], %s294
        %s296 = sand.u32 %s71, 1
        %s297 = smul.addr %s296, 32
        %s298 = scalar_lea.vmem [#allocation7], %s297
        %p299 = pneg %p84
        %p300 = pneg %p81
        %s301 = sand.u32 %s21, 1
        %s302 = scalar_lea.sflag [#allocation3], %s301
        %s303 = sand.u32 %s97, 1
        %s304 = smul.addr %s303, 16
        %s305 = scalar_lea.vmem [#allocation8], %s304
        %p306 = pneg %p110
        %p307 = pneg %p107
        %p308 = pneg %p131
        %p309 = pneg %p128
        %p310 = pneg %p157
        %p311 = pneg %p154
        %s312 = sand.u32 %s144, 1
        %s313 = scalar_lea.sflag [#allocation4], %s312
        %s314 = sand.u32 %s144, 1
        %s315 = smul.addr %s314, 16
        %s316 = scalar_lea.vmem [#allocation10], %s315
        %s317 = smul.u32 4, %s21
        %s318 = smul.u32 4, %s21
        %s319 = smul.u32 4, %s21
        %v321 = vld [vmem:[%s272] sm:$0xff]
        %v322 = vld [vmem:[%s272 + $0x8] sm:$0xff]
        %v323 = vld [vmem:[%s272 + $0x10] sm:$0xff]
        %v324 = vld [vmem:[%s272 + $0x18] sm:$0xff]
        %v325 = vld [vmem:[#allocation5] sm:$0x1]
        %327 = vset.pattern.permute.xlu0 0
        %328 = vperm.xlu0 %327, %v321
        %v329 = vpop.permute.xlu0 %328
        %332 = vset.pattern.permute.xlu0 0
        %333 = vperm.xlu0 %332, %v322
        %v334 = vpop.permute.xlu0 %333
        %337 = vset.pattern.permute.xlu0 0
        %338 = vperm.xlu0 %337, %v323
        %v339 = vpop.permute.xlu0 %338
        %342 = vset.pattern.permute.xlu0 0
        %343 = vperm.xlu0 %342, %v324
        %v344 = vpop.permute.xlu0 %343
        %v347 = vlaneseq
        %v348 = vshrl.u32 %v347, 7
        %v349 = vsub.s32 0, %v348
        %v350 = vrot.slane %v325, %v349
        %v352 = vadd.f32 %v329, %v350
        %v353 = vadd.f32 %v334, %v350
        %v354 = vadd.f32 %v339, %v350
        %v355 = vadd.f32 %v344, %v350
        %v356 = vmul.f32 %v352, 0.2
        %v357 = vmul.f32 %v353, 0.2
        %v358 = vmul.f32 %v354, 0.2
        %v359 = vmul.f32 %v355, 0.2
        %v360 = vmax.f32 %v352, %v356
        %v361 = vmax.f32 %v353, %v357
        %v362 = vmax.f32 %v354, %v358
        %v363 = vmax.f32 %v355, %v359
        %v364 = vld [vmem:[%s281] sm:$0xf]
        %v365 = vld [vmem:[%s281 + $0x4] sm:$0xf]
        %v366 = vld [vmem:[%s281 + $0x8] sm:$0xf]
        %v367 = vld [vmem:[%s281 + $0xc] sm:$0xf]
        %v368 = vunpack.c.l.bf16 %v364
        %v369 = vunpack.c.l.bf16 %v365
        %v370 = vunpack.c.l.bf16 %v366
        %v371 = vunpack.c.l.bf16 %v367
        %v372 = vadd.f32 %v360, %v368
        %v373 = vadd.f32 %v361, %v369
        %v374 = vadd.f32 %v362, %v370
        %v375 = vadd.f32 %v363, %v371
        %vm376 = vcmask 523264
        %v377 = vsel %vm376, %v372, -inf
        %378 = vmax.xlane.f32.xlu0 %v377
        %v379 = vpop.xlane.xlu0 %378
        %v380 = vsel %vm376, %v373, -inf
        %381 = vmax.xlane.f32.xlu0 %v380
        %v382 = vpop.xlane.xlu0 %381
        %v383 = vsel %vm376, %v374, -inf
        %384 = vmax.xlane.f32.xlu0 %v383
        %v385 = vpop.xlane.xlu0 %384
        %v386 = vsel %vm376, %v375, -inf
        %387 = vmax.xlane.f32.xlu0 %v386
        %v388 = vpop.xlane.xlu0 %387
        %v389 = vmax.f32 %v379, 0.0
        %v390 = vmax.f32 %v382, 0.0
        %v391 = vmax.f32 %v385, 0.0
        %v392 = vmax.f32 %v388, 0.0
        %v393 = vsub.f32 %v372, %v389
        %v394 = vsub.f32 %v373, %v390
        %v395 = vsub.f32 %v374, %v391
        %v396 = vsub.f32 %v375, %v392
        %v397 = vmul.f32 %v393, 1.442695
        %v398 = vpow.pop %v397
        %v399 = vmul.f32 %v394, 1.442695
        %v400 = vpow.pop %v399
        %v401 = vmul.f32 %v395, 1.442695
        %v402 = vpow.pop %v401
        %v403 = vmul.f32 %v396, 1.442695
        %v404 = vpow.pop %v403
        %v405 = vpack.c.bf16 %v400, %v398
        %v406 = vpack.c.bf16 %v404, %v402
        %v407 = vld [vmem:[#allocation2] sm:$0xff]
        %v408 = vld [vmem:[#allocation2 + $0x8] sm:$0xff]
        %v409 = vld [vmem:[#allocation2 + $0x10] sm:$0xff]
        %v410 = vld [vmem:[#allocation2 + $0x18] sm:$0xff]
        %v411 = vld [vmem:[#allocation2 + $0x20] sm:$0xff]
        %v412 = vld [vmem:[#allocation2 + $0x28] sm:$0xff]
        %v413 = vld [vmem:[#allocation2 + $0x30] sm:$0xff]
        %v414 = vld [vmem:[#allocation2 + $0x38] sm:$0xff]
        %v423 = vunpack.c.l.b16 %v407
        %v424 = vunpack.c.h.b16 %v407
        %v425 = vunpack.c.l.b16 %v408
        %v426 = vunpack.c.h.b16 %v408
        %v427 = vunpack.c.l.b16 %v409
        %v428 = vunpack.c.h.b16 %v409
        %v429 = vunpack.c.l.b16 %v410
        %v430 = vunpack.c.h.b16 %v410
        %v431 = vunpack.c.l.b16 %v411
        %v432 = vunpack.c.h.b16 %v411
        %v433 = vunpack.c.l.b16 %v412
        %v434 = vunpack.c.h.b16 %v412
        %v435 = vunpack.c.l.b16 %v413
        %v436 = vunpack.c.h.b16 %v413
        %v437 = vunpack.c.l.b16 %v414
        %v438 = vunpack.c.h.b16 %v414
        %v439 = vpack.c.b16 %v425, %v423
        %v440 = vpack.c.b16 %v426, %v424
        %v441 = vpack.c.b16 %v429, %v427
        %v442 = vpack.c.b16 %v430, %v428
        %v443 = vpack.c.b16 %v433, %v431
        %v444 = vpack.c.b16 %v434, %v432
        %v445 = vpack.c.b16 %v437, %v435
        %v446 = vpack.c.b16 %v438, %v436
        %v456 = vsel %vm376, %v405, 0
        %v459 = vsel %vm376, %v406, 0
        %461 = vmatprep.subr.bf16.mxu0 %v440
        %462 = vmatpush1.bf16.msra.mxu0 %v439
        %463 = vmatprep.subr.bf16.mxu0 %v442
        %464 = vmatpush1.bf16.msra.mxu0 %v441
        %465 = vmatprep.subr.bf16.mxu0 %v444
        %466 = vmatpush1.bf16.msra.mxu0 %v443
        %467 = vmatprep.subr.bf16.mxu0 %v446
        %468 = vmatpush1.bf16.msra.mxu0 %v445
        %469 = vmatprep.subr.bf16.mxu0 0
        %470 = vmatpush1.bf16.msra.mxu0 0
        %471 = vmatprep.subr.bf16.mxu0 0
        %472 = vmatpush1.bf16.msra.mxu0 0
        %473 = vmatprep.subr.bf16.mxu0 0
        %474 = vmatpush1.bf16.msra.mxu0 0
        %475 = vmatprep.subr.bf16.mxu0 0
        %476 = vmatpush1.bf16.msra.mxu0 0
        %477 = vmatprep.subr.bf16.mxu0 0
        %478 = vmatpush1.bf16.msra.mxu0 0
        %479 = vmatprep.subr.bf16.mxu0 0
        %480 = vmatpush1.bf16.msra.mxu0 0
        %481 = vmatprep.subr.bf16.mxu0 0
        %482 = vmatpush1.bf16.msra.mxu0 0
        %483 = vmatprep.subr.bf16.mxu0 0
        %484 = vmatpush1.bf16.msra.mxu0 0
        %485 = vmatprep.subr.bf16.mxu0 0
        %486 = vmatpush1.bf16.msra.mxu0 0
        %487 = vmatprep.subr.bf16.mxu0 0
        %488 = vmatpush1.bf16.msra.mxu0 0
        %489 = vmatprep.subr.bf16.mxu0 0
        %490 = vmatpush1.bf16.msra.mxu0 0
        %491 = vmatprep.subr.bf16.mxu0 0
        %492 = vmatpush1.bf16.msra.mxu0 0
        %493 = vmatprep.mubr.bf16.mxu0 0
        %494 = vmatmul.mubr.bf16.gmra.mrb[0].mxu0 %v456
        %v495 = vpop.f32.mrb[0].mxu0
        %v496 = vadd.f32 0.0, %v495
        %v497 = vpop.f32.mrb[0].mxu0
        %v498 = vadd.f32 0.0, %v497
        %v499 = vpop.f32.mrb[0].mxu0
        %v500 = vadd.f32 0.0, %v499
        %v501 = vpop.f32.mrb[0].mxu0
        %v502 = vadd.f32 0.0, %v501
        %503 = vmatprep.mubr.bf16.mxu0 0
        %504 = vmatmul.mubr.bf16.gmra.mrb[0].mxu0 %v459
        %v505 = vpop.f32.mrb[0].mxu0
        %v506 = vadd.f32 0.0, %v505
        %v507 = vpop.f32.mrb[0].mxu0
        %v508 = vadd.f32 0.0, %v507
        %v509 = vpop.f32.mrb[0].mxu0
        %v510 = vadd.f32 0.0, %v509
        %v511 = vpop.f32.mrb[0].mxu0
        %v512 = vadd.f32 0.0, %v511
        %513 = vdwg.mxu0
        %v514 = vmax.f32 %v498, 1e-30
        %v515 = vmax.f32 %v502, 1e-30
        %v516 = vmax.f32 %v508, 1e-30
        %v517 = vmax.f32 %v512, 1e-30
        %v518 = vrcp.pop %v514
        %v519 = vrcp.pop %v515
        %v520 = vrcp.pop %v516
        %v521 = vrcp.pop %v517
        %523 = vset.pattern.permute.xlu0 0
        %524 = vperm.xlu0 %523, %v518
        %v525 = vpop.permute.xlu0 %524
        %528 = vset.pattern.permute.xlu0 0
        %529 = vperm.xlu0 %528, %v519
        %v530 = vpop.permute.xlu0 %529
        %533 = vset.pattern.permute.xlu0 0
        %534 = vperm.xlu0 %533, %v520
        %v535 = vpop.permute.xlu0 %534
        %538 = vset.pattern.permute.xlu0 0
        %539 = vperm.xlu0 %538, %v521
        %v540 = vpop.permute.xlu0 %539
        %v542 = vmul.f32 %v496, %v525
        %v543 = vmul.f32 %v500, %v530
        %v544 = vmul.f32 %v506, %v535
        %v545 = vmul.f32 %v510, %v540
        %v546 = vld [vmem:[#allocation9] sm:$0x1]
        %v548 = vlaneseq
        %v549 = vshrl.u32 %v548, 7
        %v550 = vsub.s32 0, %v549
        %v551 = vrot.slane %v546, %v550
        %v553 = vadd.f32 %v542, %v551
        %v554 = vadd.f32 %v543, %v551
        %v555 = vadd.f32 %v544, %v551
        %v556 = vadd.f32 %v545, %v551
        %v557 = vmax.f32 %v553, 0.0
        %v558 = vmax.f32 %v554, 0.0
        %v559 = vmax.f32 %v555, 0.0
        %v560 = vmax.f32 %v556, 0.0
        %v561 = vpack.c.bf16 %v558, %v557
        %v562 = vpack.c.bf16 %v560, %v559
        %v565 = vunpack.c.l.b16 %v561
        %v566 = vunpack.c.h.b16 %v561
        %v567 = vunpack.c.l.b16 %v562
        %v568 = vunpack.c.h.b16 %v562
        %v569 = vpack.c.b16 %v565, %v565
        %v570 = vpack.c.b16 %v566, %v566
        %v571 = vpack.c.b16 %v567, %v567
        %v572 = vpack.c.b16 %v568, %v568
        %577 = vst [vmem:[%s316] sm:$0xf] %v569
        %578 = vst [vmem:[%s316 + $0x4] sm:$0xf] %v570
        %579 = vst [vmem:[%s316 + $0x8] sm:$0xf] %v571
        %580 = vst [vmem:[%s316 + $0xc] sm:$0xf] %v572
        %s581 = sand.u32 %s144, 1
        %s582 = scalar_lea.sflag [#allocation4], %s581
        %s583 = sand.u32 %s144, 1
        %s584 = smul.addr %s583, 16
        %s585 = scalar_lea.vmem [#allocation10], %s584
        // Predicated region
        $region61: #{ant_gnn_forward.5} parent=39 // pred_check
          %p586 = pneg %p154
        $region62: #{ant_gnn_forward.5} parent=39 // pred_check_branch
          %588 = sbr.rel (%p586) target = $region64
        $region63: #{ant_gnn_forward.5} parent=39 // pred_region
          %s589 = smul.u32 4, %s21
          %s591 = ssub.s32 256, 256
          %592 = vsyncadd %s582, %s591
          %s593 = smul.addr %s589, 64
          %s594 = scalar_lea.hbm %s5, %s593
          %s595 = sshll.u32 %s585, 4
          %s596 = int_to_ptr.vmem [resolvable:$true] %s595
          %601 = dma.vmem_to_hbm [thread:$0]  %s596, 256, %s594, %s582, 64, 64, 4
        $region64: #{ant_gnn_forward.5} parent=39 // pred_fallthru
          _
      $region40: #{ant_gnn_forward.5} parent=5 // pred_fallthru
        _
      %p602 = scmp.le.s32.totalorder 2, %s16
      // Predicated region
      $region65: #{ant_gnn_forward.5} parent=5 // pred_check
        %p603 = pneg %p602
      $region66: #{ant_gnn_forward.5} parent=5 // pred_check_branch
        %605 = sbr.rel (%p603) target = $region68
      $region67: #{ant_gnn_forward.5} parent=5 // pred_region
        %s606 = ssub.s32 %s16, 2
        // Predicated region
        $region69: #{ant_gnn_forward.5} parent=67 // pred_check
          %p607 = pneg %p160
        $region70: #{ant_gnn_forward.5} parent=67 // pred_check_branch
          %609 = sbr.rel (%p607) target = $region72
        $region71: #{ant_gnn_forward.5} parent=67 // pred_region
          %s610 = sand.u32 %s145, 1
          %s611 = scalar_lea.sflag [#allocation4], %s610
          %s612 = sand.u32 %s145, 1
          %s613 = smul.addr %s612, 16
          %s614 = scalar_lea.vmem [#allocation10], %s613
          %615 = dma.done %s611, 256
        $region72: #{ant_gnn_forward.5} parent=67 // pred_fallthru
          _
      $region68: #{ant_gnn_forward.5} parent=5 // pred_fallthru
        _
    $region6: #{ant_gnn_forward.5} parent=1 // loop_footer
      %s20 = sadd.s32 1, %s16
    $region7: #{ant_gnn_forward.5} parent=1 // loop_footer_branch
      %15 = sbr.rel target = $region3
    $region8: #{ant_gnn_forward.5} parent=1 // loop_exit
      _
    %616 = vsyncpa [#allocation3], 1
    %s617 = scalar_lea.sflag [#allocation3], 1
    %618 = vsyncpa %s617, 1
    %619 = vsyncpa [#allocation6], 1
    %620 = vsyncpa [#allocation4], 1
    %s621 = scalar_lea.sflag [#allocation4], 1
    %622 = vsyncpa %s621, 1

</llo_original>
